<compile_context>
chip_gen: v6e
topology: v6e:2x2x1
jax: 0.10.0
libtpu: 0.0.40
codegen_flags: <defaults>
</compile_context>

<pallas_src>
import jax
import jax.numpy as jnp
from jax.experimental import pallas as pl
from jax.experimental.pallas import tpu as pltpu

# ---------------------------------------------------------------------------
# constants from the PyTorch module
# ---------------------------------------------------------------------------
TRANSF_PARENT_MAPPING = [0, 0, 1, 2, 0, 4, 5, 0, 7, 8, 0, 10, 11, 0, 13, 14]
_JOINTS_MAPPING = [5, 6, 7, 9, 10, 11, 17, 18, 19, 13, 14, 15, 1, 2, 3]
_PARENT_JOINTS_MAPPING = [0, 5, 6, 0, 9, 10, 0, 17, 18, 0, 13, 14, 0, 1, 2]

_COL = 128  # lane-column width processed per inner iteration


# ---------------------------------------------------------------------------
# Pallas kernel: the matmul hot path of AxisLayerFK.forward
# ---------------------------------------------------------------------------
def _axis_fk_kernel(rgp_ref, rpa_ref, rapt_ref, rga_ref, rtc_ref):
    """One batch tile; channel-major slabs, joints on sublanes, batch on lanes.

    rgp_ref  : (9, n_cols, 16, 128)  R_g_p rotation, channel c = 3*i + j
    rpa_ref  : (9, 16, 1)            TMPL_R_p_a (constant)
    rapt_ref : (9, 16, 1)            Ra_par_tmplchd = Rpa[par]^T @ Rpa (constant)
    rga_ref  : (9, n_cols, 16, 128)  out: R_g_a rotation channels
    rtc_ref  : (9, n_cols, 16, 128)  out: Ra_tmplchd_chd channels
    """
    n_cols = rga_ref.shape[1]
    J = rga_ref.shape[2]            # 16 joints on the sublane axis
    COL = rga_ref.shape[3]          # 128 batch lanes

    # hoisted: root-joint mask on the joint (sublane) axis
    row = jax.lax.broadcasted_iota(jnp.int32, (J, COL), 0)
    is_root = (row == 0) | (row == 4) | (row == 7) | (row == 10) | (row == 13)

    def col_body(c, carry):
        # ---- Phase 1: R_g_a = R_g_p @ TMPL_R_p_a (store + keep live) ------
        rpa = [jnp.broadcast_to(rpa_ref[k], (J, COL)) for k in range(9)]
        Rga = [None] * 9
        for i in range(3):
            a0 = rgp_ref[3 * i + 0, c]
            a1 = rgp_ref[3 * i + 1, c]
            a2 = rgp_ref[3 * i + 2, c]
            for j in range(3):
                v = a0 * rpa[j] + a1 * rpa[3 + j] + a2 * rpa[6 + j]
                rga_ref[3 * i + j, c] = v
                Rga[3 * i + j] = v

        # ---- Phase 2: parent gather on the joint (sublane) axis -----------
        def parent_gather(x):                       # x[j] -> x[parent[j]]
            shifted = pltpu.roll(x, shift=1, axis=0)            # row j <- j-1
            root = jnp.broadcast_to(x[0:1, :], (J, COL))        # row 0
            return jnp.where(is_root, root, shifted)

        Rga_par = [parent_gather(v) for v in Rga]

        # ---- Phases 2+3 column-wise (low vreg pressure) --------------------
        # Rpc[k,l] = sum_m Rga_par[m,k] * Rga[m,l]   (= Ra_par_chd)
        # rtc[i,l] = sum_k Rapt[k,i]   * Rpc[k,l]    (= Rapt^T @ Rpc)
        for l in range(3):
            g0, g1, g2 = Rga[l], Rga[3 + l], Rga[6 + l]
            p0 = Rga_par[0] * g0 + Rga_par[3] * g1 + Rga_par[6] * g2
            p1 = Rga_par[1] * g0 + Rga_par[4] * g1 + Rga_par[7] * g2
            p2 = Rga_par[2] * g0 + Rga_par[5] * g1 + Rga_par[8] * g2
            for i in range(3):
                w0 = jnp.broadcast_to(rapt_ref[i], (J, COL))
                w1 = jnp.broadcast_to(rapt_ref[3 + i], (J, COL))
                w2 = jnp.broadcast_to(rapt_ref[6 + i], (J, COL))
                rtc_ref[3 * i + l, c] = w0 * p0 + w1 * p1 + w2 * p2
        return carry

    if n_cols == 1:
        col_body(0, 0)                              # fully static indexing
    else:
        jax.lax.fori_loop(0, n_cols, col_body, 0)   # bounded live ranges


# ---------------------------------------------------------------------------
# Glue: euler angles (pytorch3d matrix_to_euler_angles, convention "XYZ")
# ---------------------------------------------------------------------------
def _matrix_to_euler_xyz(R):
    # TODO(synk): atan2/asin stay in plain JAX (tiny elementwise epilogue);
    # Mosaic lowering of these transcendentals is not relied upon in-kernel.
    x = jnp.arctan2(-R[..., 1, 2], R[..., 2, 2])
    y = jnp.arcsin(jnp.clip(R[..., 0, 2], -1.0, 1.0))
    z = jnp.arctan2(-R[..., 0, 1], R[..., 0, 0])
    return jnp.stack([x, y, z], axis=-1)


# ---------------------------------------------------------------------------
# AxisAdaptiveLayer math (used only to synthesize the TMPL_R_p_a buffer)
# ---------------------------------------------------------------------------
def _axis_adaptive_layer(hand_joints, transf, side="right"):
    bs = transf.shape[0]
    jm = jnp.asarray(_JOINTS_MAPPING)
    pjm = jnp.asarray(_PARENT_JOINTS_MAPPING)
    b = hand_joints[:, pjm] - hand_joints[:, jm]
    R = transf[:, 1:, :3, :3]
    b = jnp.einsum("bjki,bjk->bji", R, b)        # R^T @ b
    b_init = jnp.array([[[1.0, 0.0, 0.0]]] if side == "right"
                       else [[[-1.0, 0.0, 0.0]]], jnp.float32)
    b = jnp.concatenate([jnp.broadcast_to(b_init, (bs, 1, 3)), b], axis=1)
    last3 = [1.0, 1.0, 1.0] if side == "right" else [-1.0, 1.0, 1.0]
    up = jnp.concatenate(
        [jnp.tile(jnp.array([[0.0, 1.0, 0.0]], jnp.float32), (13, 1)),
         jnp.tile(jnp.array([last3], jnp.float32), (3, 1))], axis=0)
    up = jnp.broadcast_to(up[None], (bs, 16, 3))
    l = jnp.cross(b, up)
    u = jnp.cross(l, b)
    nrm = lambda v: v / jnp.linalg.norm(v, axis=2, keepdims=True)
    return nrm(b), nrm(u), nrm(l)


# ---------------------------------------------------------------------------
# tiling helper
# ---------------------------------------------------------------------------
def _pick_tiling(B, block_b):
    """Pick (cols_per_tile, total_cols) in 128-lane columns.

    Big enough to amortize the fixed per-grid-step overhead, but keeps >=2
    grid blocks when the batch allows so both v7x TensorCores stay busy.
    """
    total_cols = pl.cdiv(B, _COL)
    max_cols = max(1, block_b // _COL)
    cols_per_tile = max(1, min(max_cols, pl.cdiv(total_cols, 2)))
    return cols_per_tile, total_cols


# ---------------------------------------------------------------------------
# Module
# ---------------------------------------------------------------------------
class AxisLayerFKPallas:
    """JAX/Pallas port of manotorch AxisLayerFK (forward only)."""

    def __init__(self, side="right", seed=42):
        # TODO(synk): TMPL_R_p_a is synthesized from random data (no MANO
        # asset files / ManoLayer are available); forward-pass math unchanged.
        key = jax.random.PRNGKey(seed)
        kj, kr, kt = jax.random.split(key, 3)
        tmpl_joints = jax.random.normal(kj, (1, 21, 3), jnp.float32)
        rot = jax.random.normal(kr, (1, 16, 3, 3), jnp.float32)
        tsl = jax.random.normal(kt, (1, 16, 3), jnp.float32)
        tmpl_transf = jnp.zeros((1, 16, 4, 4), jnp.float32)
        tmpl_transf = tmpl_transf.at[:, :, :3, :3].set(rot)
        tmpl_transf = tmpl_transf.at[:, :, :3, 3].set(tsl)
        tmpl_transf = tmpl_transf.at[:, :, 3, 3].set(1.0)

        b, u, l = _axis_adaptive_layer(tmpl_joints, tmpl_transf, side=side)
        self.TMPL_R_p_a = jnp.stack([b, u, l], axis=-1)        # (1, 16, 3, 3)

        zero_pad = jnp.broadcast_to(
            jnp.array([0.0, 0.0, 0.0, 1.0], jnp.float32).reshape(1, 1, 1, 4),
            (1, 16, 1, 4))
        zero_tsl = jnp.zeros((1, 16, 3, 1), jnp.float32)
        self.TMPL_T_p_a = jnp.concatenate(
            [jnp.concatenate([self.TMPL_R_p_a, zero_tsl], axis=3), zero_pad],
            axis=2)                                             # (1, 16, 4, 4)
        self.TMPL_T_g_a = jnp.einsum("bjik,bjkl->bjil", tmpl_transf,
                                     self.TMPL_T_p_a)

        # ---- batch-independent precompute + channel-major constants -------
        Rpa = self.TMPL_R_p_a[0]                                # (16, 3, 3)
        par = jnp.asarray(TRANSF_PARENT_MAPPING)
        Rapt = jnp.einsum("jki,jkl->jil", Rpa[par], Rpa)        # Rpa[par]^T @ Rpa
        self.RA_PAR_TMPLCHD = Rapt
        # (9, 16, 1) channel-major layout (channel = 3*i + j)
        self._rpa_cm = jnp.transpose(Rpa.reshape(16, 9), (1, 0))[:, :, None]
        self._rapt_cm = jnp.transpose(Rapt.reshape(16, 9), (1, 0))[:, :, None]

    # ---- forward (Pallas kernel path) ------------------------------------
    def __call__(self, transf, block_b=512):
        # block_b: max batch elements per grid block (512 good for v6e/v7x,
        # v5e users may pass 1024).
        B = transf.shape[0]
        cpt, total_cols = _pick_tiling(B, block_b)
        nb = pl.cdiv(total_cols, cpt)
        n_cols_pad = nb * cpt
        B_pad = n_cols_pad * _COL

        # channel-major, batch-on-lane layout; only the 9 rotation channels.
        rgp = transf[:, :, :3, :3].astype(jnp.float32).reshape(B, 16, 9)
        if B_pad != B:
            rgp = jnp.pad(rgp, ((0, B_pad - B), (0, 0), (0, 0)))
        rgp_cm = jnp.transpose(rgp.reshape(n_cols_pad, _COL, 16, 9),
                               (3, 0, 2, 1))                    # (9,nc,16,128)

        rga_cm, rtc_cm = pl.pallas_call(
            _axis_fk_kernel,
            out_shape=(
                jax.ShapeDtypeStruct((9, n_cols_pad, 16, _COL), jnp.float32),
                jax.ShapeDtypeStruct((9, n_cols_pad, 16, _COL), jnp.float32)),
            grid_spec=pltpu.PrefetchScalarGridSpec(
                num_scalar_prefetch=0,
                grid=(nb,),
                in_specs=[
                    pl.BlockSpec((9, cpt, 16, _COL), lambda b: (0, b, 0, 0)),
                    pl.BlockSpec((9, 16, 1), lambda b: (0, 0, 0)),
                    pl.BlockSpec((9, 16, 1), lambda b: (0, 0, 0)),
                ],
                out_specs=[
                    pl.BlockSpec((9, cpt, 16, _COL), lambda b: (0, b, 0, 0)),
                    pl.BlockSpec((9, cpt, 16, _COL), lambda b: (0, b, 0, 0)),
                ]),
            compiler_params=pltpu.CompilerParams(
                dimension_semantics=("parallel",)),
        )(rgp_cm, self._rpa_cm, self._rapt_cm)

        # ---- wrapper epilogue --------------------------------------------
        def to_batch_major(x_cm):                 # (9,nc,16,128) -> (B,16,9)
            x = jnp.transpose(x_cm, (1, 3, 2, 0))
            return x.reshape(B_pad, 16, 9)[:B]

        Rga = to_batch_major(rga_cm).reshape(B, 16, 3, 3)
        Ra_tmplchd_chd = to_batch_major(rtc_cm).reshape(B, 16, 3, 3)

        # T_g_a: kernel rotation + pass-through translation + const bottom row
        tsl = transf[:, :, :3, 3:4].astype(jnp.float32)
        bottom = jnp.broadcast_to(
            jnp.array([0.0, 0.0, 0.0, 1.0], jnp.float32).reshape(1, 1, 1, 4),
            (B, 16, 1, 4))
        T_g_a = jnp.concatenate(
            [jnp.concatenate([Rga, tsl], axis=3), bottom], axis=2)

        # euler angles (XYZ) straight from the channel-major planes (c = 3*i+j)
        ex = jnp.arctan2(-rtc_cm[5], rtc_cm[8])
        ey = jnp.arcsin(jnp.clip(rtc_cm[2], -1.0, 1.0))
        ez = jnp.arctan2(-rtc_cm[1], rtc_cm[0])
        ee = jnp.stack([ex, ey, ez], axis=-1)                 # (nc,16,128,3)
        ee = jnp.transpose(ee, (0, 2, 1, 3)).reshape(B_pad, 16, 3)[:B]
        return T_g_a, Ra_tmplchd_chd, ee

    # ---- pure-JAX reference (for correctness check) -----------------------
    def reference_forward(self, transf):
        B = transf.shape[0]
        par = jnp.asarray(TRANSF_PARENT_MAPPING)
        Rpa = self.TMPL_R_p_a[0]                                  # (16, 3, 3)
        Rgp = transf[:, :, :3, :3]
        Rga = jnp.einsum("bjik,jkl->bjil", Rgp, Rpa)
        zero_pad = jnp.broadcast_to(
            jnp.array([0.0, 0.0, 0.0, 1.0], jnp.float32).reshape(1, 1, 1, 4),
            (B, 16, 1, 4))
        Tga = jnp.concatenate(
            [jnp.concatenate([Rga, transf[:, :, :3, 3:4]], axis=3), zero_pad],
            axis=2)
        Ta_pc = jnp.einsum("bjki,bjkl->bjil", Tga[:, par], Tga)
        Ra_pc = Ta_pc[:, :, :3, :3]
        Ra_p_tc = jnp.einsum("jki,jkl->jil", Rpa[par], Rpa)
        Ra_c_tc = jnp.einsum("bjki,jkl->bjil", Ra_pc, Ra_p_tc)
        Rtc = jnp.swapaxes(Ra_c_tc, 2, 3)
        return Tga, Rtc, _matrix_to_euler_xyz(Rtc)


# ---------------------------------------------------------------------------
# helpers for building deterministic example inputs
# ---------------------------------------------------------------------------
def _quat_to_rotmat(q):
    w, x, y, z = q[..., 0], q[..., 1], q[..., 2], q[..., 3]
    R = jnp.stack([
        1 - 2 * (y * y + z * z), 2 * (x * y - w * z), 2 * (x * z + w * y),
        2 * (x * y + w * z), 1 - 2 * (x * x + z * z), 2 * (y * z - w * x),
        2 * (x * z - w * y), 2 * (y * z + w * x), 1 - 2 * (x * x + y * y)],
        axis=-1)
    return R.reshape(q.shape[:-1] + (3, 3))


def _make_transf(key, B):
    kq, kt = jax.random.split(key)
    quat = jax.random.normal(kq, (B, 16, 4), jnp.float32)
    quat = quat / jnp.linalg.norm(quat, axis=-1, keepdims=True)
    R = _quat_to_rotmat(quat)
    tsl = 0.1 * jax.random.normal(kt, (B, 16, 3), jnp.float32)
    transf = jnp.zeros((B, 16, 4, 4), jnp.float32)
    transf = transf.at[:, :, :3, :3].set(R)
    transf = transf.at[:, :, :3, 3].set(tsl)
    transf = transf.at[:, :, 3, 3].set(1.0)
    return transf


if __name__ == "__main__":
    layer = AxisLayerFKPallas(side="right")
    fwd = jax.jit(layer.__call__)

    # small smoke test (single grid block, single 128-lane column)
    B = 2
    transf = _make_transf(jax.random.PRNGKey(0), B)
    T_g_a, Ra, ee = fwd(transf)
    jax.block_until_ready((T_g_a, Ra, ee))

    T_ref, Ra_ref, ee_ref = layer.reference_forward(transf)
    assert T_g_a.shape == (B, 16, 4, 4) and Ra.shape == (B, 16, 3, 3)
    assert ee.shape == (B, 16, 3)
    assert jnp.allclose(T_g_a, T_ref, atol=1e-4, rtol=1e-4), "T_g_a mismatch"
    assert jnp.allclose(Ra, Ra_ref, atol=1e-4, rtol=1e-4), "Ra mismatch"

    # second check: exercises padding, the 2-block grid and the in-kernel
    # multi-column loop (B=300 -> 2 grid blocks x 2 columns, 212 padded lanes)
    B2 = 300
    transf2 = _make_transf(jax.random.PRNGKey(1), B2)
    T2, Ra2, ee2 = jax.jit(layer.__call__)(transf2)
    jax.block_until_ready((T2, Ra2, ee2))
    T2_ref, Ra2_ref, _ = layer.reference_forward(transf2)
    assert jnp.allclose(T2, T2_ref, atol=1e-4, rtol=1e-4), "T_g_a mismatch (B=300)"
    assert jnp.allclose(Ra2, Ra2_ref, atol=1e-4, rtol=1e-4), "Ra mismatch (B=300)"

    print("KERNEL_OK")
</pallas_src>

<mosaic_0001>
module attributes {stable_mosaic.version = 11 : i64} {
  func.func @_axis_fk_kernel(%arg0: i32, %arg1: memref<9x1x16x128xf32, #tpu.memory_space<vmem>>, %arg2: memref<9x16x1xf32, #tpu.memory_space<vmem>>, %arg3: memref<9x16x1xf32, #tpu.memory_space<vmem>>, %arg4: memref<9x1x16x128xf32, #tpu.memory_space<vmem>>, %arg5: memref<9x1x16x128xf32, #tpu.memory_space<vmem>>) attributes {dimension_semantics = [#tpu.dimension_semantics<parallel>], iteration_bounds = array<i64: 1>, scalar_prefetch = 0 : i64, scratch_operands = 0 : i64, tpu.core_type = #tpu.core_type<tc>, window_params = [{transform_indices = @transform_0, window_bounds = array<i64: 9, 1, 16, 128>}, {pipeline_mode = #tpu.pipeline_mode<synchronous>, transform_indices = @transform_1, window_bounds = array<i64: 9, 16, 1>}, {pipeline_mode = #tpu.pipeline_mode<synchronous>, transform_indices = @transform_2, window_bounds = array<i64: 9, 16, 1>}, {transform_indices = @transform_3, window_bounds = array<i64: 9, 1, 16, 128>}, {transform_indices = @transform_4, window_bounds = array<i64: 9, 1, 16, 128>}]} {
    %0 = tpu.iota {dimensions = array<i32: 0>} : vector<16x128xi32>
    %c0_i32 = arith.constant 0 : i32
    %1 = vector.broadcast %c0_i32 : i32 to vector<16x128xi32>
    %2 = arith.cmpi eq, %0, %1 : vector<16x128xi32>
    %c4_i32 = arith.constant 4 : i32
    %3 = vector.broadcast %c4_i32 : i32 to vector<16x128xi32>
    %4 = arith.cmpi eq, %0, %3 : vector<16x128xi32>
    %5 = arith.ori %2, %4 : vector<16x128xi1>
    %c7_i32 = arith.constant 7 : i32
    %6 = vector.broadcast %c7_i32 : i32 to vector<16x128xi32>
    %7 = arith.cmpi eq, %0, %6 : vector<16x128xi32>
    %8 = arith.ori %5, %7 : vector<16x128xi1>
    %c10_i32 = arith.constant 10 : i32
    %9 = vector.broadcast %c10_i32 : i32 to vector<16x128xi32>
    %10 = arith.cmpi eq, %0, %9 : vector<16x128xi32>
    %11 = arith.ori %8, %10 : vector<16x128xi1>
    %c13_i32 = arith.constant 13 : i32
    %12 = vector.broadcast %c13_i32 : i32 to vector<16x128xi32>
    %13 = arith.cmpi eq, %0, %12 : vector<16x128xi32>
    %14 = arith.ori %11, %13 : vector<16x128xi1>
    %c0 = arith.constant 0 : index
    %c0_0 = arith.constant 0 : index
    %c0_1 = arith.constant 0 : index
    %15 = vector.load %arg2[%c0, %c0_0, %c0_1] : memref<9x16x1xf32, #tpu.memory_space<vmem>>, vector<1x16x1xf32>
    %16 = vector.shape_cast %15 : vector<1x16x1xf32> to vector<16x1xf32>
    %17 = vector.shape_cast %16 : vector<16x1xf32> to vector<16x1xf32>
    %18 = vector.broadcast %17 : vector<16x1xf32> to vector<16x128xf32>
    %c1 = arith.constant 1 : index
    %c0_2 = arith.constant 0 : index
    %c0_3 = arith.constant 0 : index
    %19 = vector.load %arg2[%c1, %c0_2, %c0_3] : memref<9x16x1xf32, #tpu.memory_space<vmem>>, vector<1x16x1xf32>
    %20 = vector.shape_cast %19 : vector<1x16x1xf32> to vector<16x1xf32>
    %21 = vector.shape_cast %20 : vector<16x1xf32> to vector<16x1xf32>
    %22 = vector.broadcast %21 : vector<16x1xf32> to vector<16x128xf32>
    %c2 = arith.constant 2 : index
    %c0_4 = arith.constant 0 : index
    %c0_5 = arith.constant 0 : index
    %23 = vector.load %arg2[%c2, %c0_4, %c0_5] : memref<9x16x1xf32, #tpu.memory_space<vmem>>, vector<1x16x1xf32>
    %24 = vector.shape_cast %23 : vector<1x16x1xf32> to vector<16x1xf32>
    %25 = vector.shape_cast %24 : vector<16x1xf32> to vector<16x1xf32>
    %26 = vector.broadcast %25 : vector<16x1xf32> to vector<16x128xf32>
    %c3 = arith.constant 3 : index
    %c0_6 = arith.constant 0 : index
    %c0_7 = arith.constant 0 : index
    %27 = vector.load %arg2[%c3, %c0_6, %c0_7] : memref<9x16x1xf32, #tpu.memory_space<vmem>>, vector<1x16x1xf32>
    %28 = vector.shape_cast %27 : vector<1x16x1xf32> to vector<16x1xf32>
    %29 = vector.shape_cast %28 : vector<16x1xf32> to vector<16x1xf32>
    %30 = vector.broadcast %29 : vector<16x1xf32> to vector<16x128xf32>
    %c4 = arith.constant 4 : index
    %c0_8 = arith.constant 0 : index
    %c0_9 = arith.constant 0 : index
    %31 = vector.load %arg2[%c4, %c0_8, %c0_9] : memref<9x16x1xf32, #tpu.memory_space<vmem>>, vector<1x16x1xf32>
    %32 = vector.shape_cast %31 : vector<1x16x1xf32> to vector<16x1xf32>
    %33 = vector.shape_cast %32 : vector<16x1xf32> to vector<16x1xf32>
    %34 = vector.broadcast %33 : vector<16x1xf32> to vector<16x128xf32>
    %c5 = arith.constant 5 : index
    %c0_10 = arith.constant 0 : index
    %c0_11 = arith.constant 0 : index
    %35 = vector.load %arg2[%c5, %c0_10, %c0_11] : memref<9x16x1xf32, #tpu.memory_space<vmem>>, vector<1x16x1xf32>
    %36 = vector.shape_cast %35 : vector<1x16x1xf32> to vector<16x1xf32>
    %37 = vector.shape_cast %36 : vector<16x1xf32> to vector<16x1xf32>
    %38 = vector.broadcast %37 : vector<16x1xf32> to vector<16x128xf32>
    %c6 = arith.constant 6 : index
    %c0_12 = arith.constant 0 : index
    %c0_13 = arith.constant 0 : index
    %39 = vector.load %arg2[%c6, %c0_12, %c0_13] : memref<9x16x1xf32, #tpu.memory_space<vmem>>, vector<1x16x1xf32>
    %40 = vector.shape_cast %39 : vector<1x16x1xf32> to vector<16x1xf32>
    %41 = vector.shape_cast %40 : vector<16x1xf32> to vector<16x1xf32>
    %42 = vector.broadcast %41 : vector<16x1xf32> to vector<16x128xf32>
    %c7 = arith.constant 7 : index
    %c0_14 = arith.constant 0 : index
    %c0_15 = arith.constant 0 : index
    %43 = vector.load %arg2[%c7, %c0_14, %c0_15] : memref<9x16x1xf32, #tpu.memory_space<vmem>>, vector<1x16x1xf32>
    %44 = vector.shape_cast %43 : vector<1x16x1xf32> to vector<16x1xf32>
    %45 = vector.shape_cast %44 : vector<16x1xf32> to vector<16x1xf32>
    %46 = vector.broadcast %45 : vector<16x1xf32> to vector<16x128xf32>
    %c8 = arith.constant 8 : index
    %c0_16 = arith.constant 0 : index
    %c0_17 = arith.constant 0 : index
    %47 = vector.load %arg2[%c8, %c0_16, %c0_17] : memref<9x16x1xf32, #tpu.memory_space<vmem>>, vector<1x16x1xf32>
    %48 = vector.shape_cast %47 : vector<1x16x1xf32> to vector<16x1xf32>
    %49 = vector.shape_cast %48 : vector<16x1xf32> to vector<16x1xf32>
    %50 = vector.broadcast %49 : vector<16x1xf32> to vector<16x128xf32>
    %c0_18 = arith.constant 0 : index
    %c0_19 = arith.constant 0 : index
    %c0_20 = arith.constant 0 : index
    %c0_21 = arith.constant 0 : index
    %51 = vector.load %arg1[%c0_18, %c0_19, %c0_20, %c0_21] : memref<9x1x16x128xf32, #tpu.memory_space<vmem>>, vector<1x1x16x128xf32>
    %52 = vector.shape_cast %51 : vector<1x1x16x128xf32> to vector<16x128xf32>
    %c1_22 = arith.constant 1 : index
    %c0_23 = arith.constant 0 : index
    %c0_24 = arith.constant 0 : index
    %c0_25 = arith.constant 0 : index
    %53 = vector.load %arg1[%c1_22, %c0_23, %c0_24, %c0_25] : memref<9x1x16x128xf32, #tpu.memory_space<vmem>>, vector<1x1x16x128xf32>
    %54 = vector.shape_cast %53 : vector<1x1x16x128xf32> to vector<16x128xf32>
    %c2_26 = arith.constant 2 : index
    %c0_27 = arith.constant 0 : index
    %c0_28 = arith.constant 0 : index
    %c0_29 = arith.constant 0 : index
    %55 = vector.load %arg1[%c2_26, %c0_27, %c0_28, %c0_29] : memref<9x1x16x128xf32, #tpu.memory_space<vmem>>, vector<1x1x16x128xf32>
    %56 = vector.shape_cast %55 : vector<1x1x16x128xf32> to vector<16x128xf32>
    %57 = arith.mulf %52, %18 : vector<16x128xf32>
    %58 = arith.mulf %54, %30 : vector<16x128xf32>
    %59 = arith.addf %57, %58 : vector<16x128xf32>
    %60 = arith.mulf %56, %42 : vector<16x128xf32>
    %61 = arith.addf %59, %60 : vector<16x128xf32>
    %c0_30 = arith.constant 0 : index
    %c0_31 = arith.constant 0 : index
    %c0_32 = arith.constant 0 : index
    %c0_33 = arith.constant 0 : index
    %62 = vector.load %arg4[%c0_30, %c0_31, %c0_32, %c0_33] : memref<9x1x16x128xf32, #tpu.memory_space<vmem>>, vector<1x1x16x128xf32>
    %63 = vector.shape_cast %62 : vector<1x1x16x128xf32> to vector<16x128xf32>
    %64 = vector.shape_cast %61 : vector<16x128xf32> to vector<1x1x16x128xf32>
    tpu.vector_store %arg4[%c0_30, %c0_31, %c0_32, %c0_33], %64 {strides = array<i32>} : memref<9x1x16x128xf32, #tpu.memory_space<vmem>>, vector<1x1x16x128xf32>,
    %65 = arith.mulf %52, %22 : vector<16x128xf32>
    %66 = arith.mulf %54, %34 : vector<16x128xf32>
    %67 = arith.addf %65, %66 : vector<16x128xf32>
    %68 = arith.mulf %56, %46 : vector<16x128xf32>
    %69 = arith.addf %67, %68 : vector<16x128xf32>
    %c1_34 = arith.constant 1 : index
    %c0_35 = arith.constant 0 : index
    %c0_36 = arith.constant 0 : index
    %c0_37 = arith.constant 0 : index
    %70 = vector.load %arg4[%c1_34, %c0_35, %c0_36, %c0_37] : memref<9x1x16x128xf32, #tpu.memory_space<vmem>>, vector<1x1x16x128xf32>
    %71 = vector.shape_cast %70 : vector<1x1x16x128xf32> to vector<16x128xf32>
    %72 = vector.shape_cast %69 : vector<16x128xf32> to vector<1x1x16x128xf32>
    tpu.vector_store %arg4[%c1_34, %c0_35, %c0_36, %c0_37], %72 {strides = array<i32>} : memref<9x1x16x128xf32, #tpu.memory_space<vmem>>, vector<1x1x16x128xf32>,
    %73 = arith.mulf %52, %26 : vector<16x128xf32>
    %74 = arith.mulf %54, %38 : vector<16x128xf32>
    %75 = arith.addf %73, %74 : vector<16x128xf32>
    %76 = arith.mulf %56, %50 : vector<16x128xf32>
    %77 = arith.addf %75, %76 : vector<16x128xf32>
    %c2_38 = arith.constant 2 : index
    %c0_39 = arith.constant 0 : index
    %c0_40 = arith.constant 0 : index
    %c0_41 = arith.constant 0 : index
    %78 = vector.load %arg4[%c2_38, %c0_39, %c0_40, %c0_41] : memref<9x1x16x128xf32, #tpu.memory_space<vmem>>, vector<1x1x16x128xf32>
    %79 = vector.shape_cast %78 : vector<1x1x16x128xf32> to vector<16x128xf32>
    %80 = vector.shape_cast %77 : vector<16x128xf32> to vector<1x1x16x128xf32>
    tpu.vector_store %arg4[%c2_38, %c0_39, %c0_40, %c0_41], %80 {strides = array<i32>} : memref<9x1x16x128xf32, #tpu.memory_space<vmem>>, vector<1x1x16x128xf32>,
    %c3_42 = arith.constant 3 : index
    %c0_43 = arith.constant 0 : index
    %c0_44 = arith.constant 0 : index
    %c0_45 = arith.constant 0 : index
    %81 = vector.load %arg1[%c3_42, %c0_43, %c0_44, %c0_45] : memref<9x1x16x128xf32, #tpu.memory_space<vmem>>, vector<1x1x16x128xf32>
    %82 = vector.shape_cast %81 : vector<1x1x16x128xf32> to vector<16x128xf32>
    %c4_46 = arith.constant 4 : index
    %c0_47 = arith.constant 0 : index
    %c0_48 = arith.constant 0 : index
    %c0_49 = arith.constant 0 : index
    %83 = vector.load %arg1[%c4_46, %c0_47, %c0_48, %c0_49] : memref<9x1x16x128xf32, #tpu.memory_space<vmem>>, vector<1x1x16x128xf32>
    %84 = vector.shape_cast %83 : vector<1x1x16x128xf32> to vector<16x128xf32>
    %c5_50 = arith.constant 5 : index
    %c0_51 = arith.constant 0 : index
    %c0_52 = arith.constant 0 : index
    %c0_53 = arith.constant 0 : index
    %85 = vector.load %arg1[%c5_50, %c0_51, %c0_52, %c0_53] : memref<9x1x16x128xf32, #tpu.memory_space<vmem>>, vector<1x1x16x128xf32>
    %86 = vector.shape_cast %85 : vector<1x1x16x128xf32> to vector<16x128xf32>
    %87 = arith.mulf %82, %18 : vector<16x128xf32>
    %88 = arith.mulf %84, %30 : vector<16x128xf32>
    %89 = arith.addf %87, %88 : vector<16x128xf32>
    %90 = arith.mulf %86, %42 : vector<16x128xf32>
    %91 = arith.addf %89, %90 : vector<16x128xf32>
    %c3_54 = arith.constant 3 : index
    %c0_55 = arith.constant 0 : index
    %c0_56 = arith.constant 0 : index
    %c0_57 = arith.constant 0 : index
    %92 = vector.load %arg4[%c3_54, %c0_55, %c0_56, %c0_57] : memref<9x1x16x128xf32, #tpu.memory_space<vmem>>, vector<1x1x16x128xf32>
    %93 = vector.shape_cast %92 : vector<1x1x16x128xf32> to vector<16x128xf32>
    %94 = vector.shape_cast %91 : vector<16x128xf32> to vector<1x1x16x128xf32>
    tpu.vector_store %arg4[%c3_54, %c0_55, %c0_56, %c0_57], %94 {strides = array<i32>} : memref<9x1x16x128xf32, #tpu.memory_space<vmem>>, vector<1x1x16x128xf32>,
    %95 = arith.mulf %82, %22 : vector<16x128xf32>
    %96 = arith.mulf %84, %34 : vector<16x128xf32>
    %97 = arith.addf %95, %96 : vector<16x128xf32>
    %98 = arith.mulf %86, %46 : vector<16x128xf32>
    %99 = arith.addf %97, %98 : vector<16x128xf32>
    %c4_58 = arith.constant 4 : index
    %c0_59 = arith.constant 0 : index
    %c0_60 = arith.constant 0 : index
    %c0_61 = arith.constant 0 : index
    %100 = vector.load %arg4[%c4_58, %c0_59, %c0_60, %c0_61] : memref<9x1x16x128xf32, #tpu.memory_space<vmem>>, vector<1x1x16x128xf32>
    %101 = vector.shape_cast %100 : vector<1x1x16x128xf32> to vector<16x128xf32>
    %102 = vector.shape_cast %99 : vector<16x128xf32> to vector<1x1x16x128xf32>
    tpu.vector_store %arg4[%c4_58, %c0_59, %c0_60, %c0_61], %102 {strides = array<i32>} : memref<9x1x16x128xf32, #tpu.memory_space<vmem>>, vector<1x1x16x128xf32>,
    %103 = arith.mulf %82, %26 : vector<16x128xf32>
    %104 = arith.mulf %84, %38 : vector<16x128xf32>
    %105 = arith.addf %103, %104 : vector<16x128xf32>
    %106 = arith.mulf %86, %50 : vector<16x128xf32>
    %107 = arith.addf %105, %106 : vector<16x128xf32>
    %c5_62 = arith.constant 5 : index
    %c0_63 = arith.constant 0 : index
    %c0_64 = arith.constant 0 : index
    %c0_65 = arith.constant 0 : index
    %108 = vector.load %arg4[%c5_62, %c0_63, %c0_64, %c0_65] : memref<9x1x16x128xf32, #tpu.memory_space<vmem>>, vector<1x1x16x128xf32>
    %109 = vector.shape_cast %108 : vector<1x1x16x128xf32> to vector<16x128xf32>
    %110 = vector.shape_cast %107 : vector<16x128xf32> to vector<1x1x16x128xf32>
    tpu.vector_store %arg4[%c5_62, %c0_63, %c0_64, %c0_65], %110 {strides = array<i32>} : memref<9x1x16x128xf32, #tpu.memory_space<vmem>>, vector<1x1x16x128xf32>,
    %c6_66 = arith.constant 6 : index
    %c0_67 = arith.constant 0 : index
    %c0_68 = arith.constant 0 : index
    %c0_69 = arith.constant 0 : index
    %111 = vector.load %arg1[%c6_66, %c0_67, %c0_68, %c0_69] : memref<9x1x16x128xf32, #tpu.memory_space<vmem>>, vector<1x1x16x128xf32>
    %112 = vector.shape_cast %111 : vector<1x1x16x128xf32> to vector<16x128xf32>
    %c7_70 = arith.constant 7 : index
    %c0_71 = arith.constant 0 : index
    %c0_72 = arith.constant 0 : index
    %c0_73 = arith.constant 0 : index
    %113 = vector.load %arg1[%c7_70, %c0_71, %c0_72, %c0_73] : memref<9x1x16x128xf32, #tpu.memory_space<vmem>>, vector<1x1x16x128xf32>
    %114 = vector.shape_cast %113 : vector<1x1x16x128xf32> to vector<16x128xf32>
    %c8_74 = arith.constant 8 : index
    %c0_75 = arith.constant 0 : index
    %c0_76 = arith.constant 0 : index
    %c0_77 = arith.constant 0 : index
    %115 = vector.load %arg1[%c8_74, %c0_75, %c0_76, %c0_77] : memref<9x1x16x128xf32, #tpu.memory_space<vmem>>, vector<1x1x16x128xf32>
    %116 = vector.shape_cast %115 : vector<1x1x16x128xf32> to vector<16x128xf32>
    %117 = arith.mulf %112, %18 : vector<16x128xf32>
    %118 = arith.mulf %114, %30 : vector<16x128xf32>
    %119 = arith.addf %117, %118 : vector<16x128xf32>
    %120 = arith.mulf %116, %42 : vector<16x128xf32>
    %121 = arith.addf %119, %120 : vector<16x128xf32>
    %c6_78 = arith.constant 6 : index
    %c0_79 = arith.constant 0 : index
    %c0_80 = arith.constant 0 : index
    %c0_81 = arith.constant 0 : index
    %122 = vector.load %arg4[%c6_78, %c0_79, %c0_80, %c0_81] : memref<9x1x16x128xf32, #tpu.memory_space<vmem>>, vector<1x1x16x128xf32>
    %123 = vector.shape_cast %122 : vector<1x1x16x128xf32> to vector<16x128xf32>
    %124 = vector.shape_cast %121 : vector<16x128xf32> to vector<1x1x16x128xf32>
    tpu.vector_store %arg4[%c6_78, %c0_79, %c0_80, %c0_81], %124 {strides = array<i32>} : memref<9x1x16x128xf32, #tpu.memory_space<vmem>>, vector<1x1x16x128xf32>,
    %125 = arith.mulf %112, %22 : vector<16x128xf32>
    %126 = arith.mulf %114, %34 : vector<16x128xf32>
    %127 = arith.addf %125, %126 : vector<16x128xf32>
    %128 = arith.mulf %116, %46 : vector<16x128xf32>
    %129 = arith.addf %127, %128 : vector<16x128xf32>
    %c7_82 = arith.constant 7 : index
    %c0_83 = arith.constant 0 : index
    %c0_84 = arith.constant 0 : index
    %c0_85 = arith.constant 0 : index
    %130 = vector.load %arg4[%c7_82, %c0_83, %c0_84, %c0_85] : memref<9x1x16x128xf32, #tpu.memory_space<vmem>>, vector<1x1x16x128xf32>
    %131 = vector.shape_cast %130 : vector<1x1x16x128xf32> to vector<16x128xf32>
    %132 = vector.shape_cast %129 : vector<16x128xf32> to vector<1x1x16x128xf32>
    tpu.vector_store %arg4[%c7_82, %c0_83, %c0_84, %c0_85], %132 {strides = array<i32>} : memref<9x1x16x128xf32, #tpu.memory_space<vmem>>, vector<1x1x16x128xf32>,
    %133 = arith.mulf %112, %26 : vector<16x128xf32>
    %134 = arith.mulf %114, %38 : vector<16x128xf32>
    %135 = arith.addf %133, %134 : vector<16x128xf32>
    %136 = arith.mulf %116, %50 : vector<16x128xf32>
    %137 = arith.addf %135, %136 : vector<16x128xf32>
    %c8_86 = arith.constant 8 : index
    %c0_87 = arith.constant 0 : index
    %c0_88 = arith.constant 0 : index
    %c0_89 = arith.constant 0 : index
    %138 = vector.load %arg4[%c8_86, %c0_87, %c0_88, %c0_89] : memref<9x1x16x128xf32, #tpu.memory_space<vmem>>, vector<1x1x16x128xf32>
    %139 = vector.shape_cast %138 : vector<1x1x16x128xf32> to vector<16x128xf32>
    %140 = vector.shape_cast %137 : vector<16x128xf32> to vector<1x1x16x128xf32>
    tpu.vector_store %arg4[%c8_86, %c0_87, %c0_88, %c0_89], %140 {strides = array<i32>} : memref<9x1x16x128xf32, #tpu.memory_space<vmem>>, vector<1x1x16x128xf32>,
    %c1_i32 = arith.constant 1 : i32
    %141 = tpu.dynamic_rotate %61 by %c1_i32 dim 0 : vector<16x128xf32>, i32 -> vector<16x128xf32>
    %142 = vector.extract_strided_slice %61 {offsets = [0, 0], sizes = [1, 128], strides = [1, 1]} : vector<16x128xf32> to vector<1x128xf32>
    %143 = vector.shape_cast %142 : vector<1x128xf32> to vector<1x128xf32>
    %144 = vector.broadcast %143 : vector<1x128xf32> to vector<16x128xf32>
    %145 = arith.select %14, %144, %141 : vector<16x128xi1>, vector<16x128xf32>
    %c1_i32_90 = arith.constant 1 : i32
    %146 = tpu.dynamic_rotate %69 by %c1_i32_90 dim 0 : vector<16x128xf32>, i32 -> vector<16x128xf32>
    %147 = vector.extract_strided_slice %69 {offsets = [0, 0], sizes = [1, 128], strides = [1, 1]} : vector<16x128xf32> to vector<1x128xf32>
    %148 = vector.shape_cast %147 : vector<1x128xf32> to vector<1x128xf32>
    %149 = vector.broadcast %148 : vector<1x128xf32> to vector<16x128xf32>
    %150 = arith.select %14, %149, %146 : vector<16x128xi1>, vector<16x128xf32>
    %c1_i32_91 = arith.constant 1 : i32
    %151 = tpu.dynamic_rotate %77 by %c1_i32_91 dim 0 : vector<16x128xf32>, i32 -> vector<16x128xf32>
    %152 = vector.extract_strided_slice %77 {offsets = [0, 0], sizes = [1, 128], strides = [1, 1]} : vector<16x128xf32> to vector<1x128xf32>
    %153 = vector.shape_cast %152 : vector<1x128xf32> to vector<1x128xf32>
    %154 = vector.broadcast %153 : vector<1x128xf32> to vector<16x128xf32>
    %155 = arith.select %14, %154, %151 : vector<16x128xi1>, vector<16x128xf32>
    %c1_i32_92 = arith.constant 1 : i32
    %156 = tpu.dynamic_rotate %91 by %c1_i32_92 dim 0 : vector<16x128xf32>, i32 -> vector<16x128xf32>
    %157 = vector.extract_strided_slice %91 {offsets = [0, 0], sizes = [1, 128], strides = [1, 1]} : vector<16x128xf32> to vector<1x128xf32>
    %158 = vector.shape_cast %157 : vector<1x128xf32> to vector<1x128xf32>
    %159 = vector.broadcast %158 : vector<1x128xf32> to vector<16x128xf32>
    %160 = arith.select %14, %159, %156 : vector<16x128xi1>, vector<16x128xf32>
    %c1_i32_93 = arith.constant 1 : i32
    %161 = tpu.dynamic_rotate %99 by %c1_i32_93 dim 0 : vector<16x128xf32>, i32 -> vector<16x128xf32>
    %162 = vector.extract_strided_slice %99 {offsets = [0, 0], sizes = [1, 128], strides = [1, 1]} : vector<16x128xf32> to vector<1x128xf32>
    %163 = vector.shape_cast %162 : vector<1x128xf32> to vector<1x128xf32>
    %164 = vector.broadcast %163 : vector<1x128xf32> to vector<16x128xf32>
    %165 = arith.select %14, %164, %161 : vector<16x128xi1>, vector<16x128xf32>
    %c1_i32_94 = arith.constant 1 : i32
    %166 = tpu.dynamic_rotate %107 by %c1_i32_94 dim 0 : vector<16x128xf32>, i32 -> vector<16x128xf32>
    %167 = vector.extract_strided_slice %107 {offsets = [0, 0], sizes = [1, 128], strides = [1, 1]} : vector<16x128xf32> to vector<1x128xf32>
    %168 = vector.shape_cast %167 : vector<1x128xf32> to vector<1x128xf32>
    %169 = vector.broadcast %168 : vector<1x128xf32> to vector<16x128xf32>
    %170 = arith.select %14, %169, %166 : vector<16x128xi1>, vector<16x128xf32>
    %c1_i32_95 = arith.constant 1 : i32
    %171 = tpu.dynamic_rotate %121 by %c1_i32_95 dim 0 : vector<16x128xf32>, i32 -> vector<16x128xf32>
    %172 = vector.extract_strided_slice %121 {offsets = [0, 0], sizes = [1, 128], strides = [1, 1]} : vector<16x128xf32> to vector<1x128xf32>
    %173 = vector.shape_cast %172 : vector<1x128xf32> to vector<1x128xf32>
    %174 = vector.broadcast %173 : vector<1x128xf32> to vector<16x128xf32>
    %175 = arith.select %14, %174, %171 : vector<16x128xi1>, vector<16x128xf32>
    %c1_i32_96 = arith.constant 1 : i32
    %176 = tpu.dynamic_rotate %129 by %c1_i32_96 dim 0 : vector<16x128xf32>, i32 -> vector<16x128xf32>
    %177 = vector.extract_strided_slice %129 {offsets = [0, 0], sizes = [1, 128], strides = [1, 1]} : vector<16x128xf32> to vector<1x128xf32>
    %178 = vector.shape_cast %177 : vector<1x128xf32> to vector<1x128xf32>
    %179 = vector.broadcast %178 : vector<1x128xf32> to vector<16x128xf32>
    %180 = arith.select %14, %179, %176 : vector<16x128xi1>, vector<16x128xf32>
    %c1_i32_97 = arith.constant 1 : i32
    %181 = tpu.dynamic_rotate %137 by %c1_i32_97 dim 0 : vector<16x128xf32>, i32 -> vector<16x128xf32>
    %182 = vector.extract_strided_slice %137 {offsets = [0, 0], sizes = [1, 128], strides = [1, 1]} : vector<16x128xf32> to vector<1x128xf32>
    %183 = vector.shape_cast %182 : vector<1x128xf32> to vector<1x128xf32>
    %184 = vector.broadcast %183 : vector<1x128xf32> to vector<16x128xf32>
    %185 = arith.select %14, %184, %181 : vector<16x128xi1>, vector<16x128xf32>
    %186 = arith.mulf %145, %61 : vector<16x128xf32>
    %187 = arith.mulf %160, %91 : vector<16x128xf32>
    %188 = arith.addf %186, %187 : vector<16x128xf32>
    %189 = arith.mulf %175, %121 : vector<16x128xf32>
    %190 = arith.addf %188, %189 : vector<16x128xf32>
    %191 = arith.mulf %150, %61 : vector<16x128xf32>
    %192 = arith.mulf %165, %91 : vector<16x128xf32>
    %193 = arith.addf %191, %192 : vector<16x128xf32>
    %194 = arith.mulf %180, %121 : vector<16x128xf32>
    %195 = arith.addf %193, %194 : vector<16x128xf32>
    %196 = arith.mulf %155, %61 : vector<16x128xf32>
    %197 = arith.mulf %170, %91 : vector<16x128xf32>
    %198 = arith.addf %196, %197 : vector<16x128xf32>
    %199 = arith.mulf %185, %121 : vector<16x128xf32>
    %200 = arith.addf %198, %199 : vector<16x128xf32>
    %c0_98 = arith.constant 0 : index
    %c0_99 = arith.constant 0 : index
    %c0_100 = arith.constant 0 : index
    %201 = vector.load %arg3[%c0_98, %c0_99, %c0_100] : memref<9x16x1xf32, #tpu.memory_space<vmem>>, vector<1x16x1xf32>
    %202 = vector.shape_cast %201 : vector<1x16x1xf32> to vector<16x1xf32>
    %203 = vector.shape_cast %202 : vector<16x1xf32> to vector<16x1xf32>
    %204 = vector.broadcast %203 : vector<16x1xf32> to vector<16x128xf32>
    %c3_101 = arith.constant 3 : index
    %c0_102 = arith.constant 0 : index
    %c0_103 = arith.constant 0 : index
    %205 = vector.load %arg3[%c3_101, %c0_102, %c0_103] : memref<9x16x1xf32, #tpu.memory_space<vmem>>, vector<1x16x1xf32>
    %206 = vector.shape_cast %205 : vector<1x16x1xf32> to vector<16x1xf32>
    %207 = vector.shape_cast %206 : vector<16x1xf32> to vector<16x1xf32>
    %208 = vector.broadcast %207 : vector<16x1xf32> to vector<16x128xf32>
    %c6_104 = arith.constant 6 : index
    %c0_105 = arith.constant 0 : index
    %c0_106 = arith.constant 0 : index
    %209 = vector.load %arg3[%c6_104, %c0_105, %c0_106] : memref<9x16x1xf32, #tpu.memory_space<vmem>>, vector<1x16x1xf32>
    %210 = vector.shape_cast %209 : vector<1x16x1xf32> to vector<16x1xf32>
    %211 = vector.shape_cast %210 : vector<16x1xf32> to vector<16x1xf32>
    %212 = vector.broadcast %211 : vector<16x1xf32> to vector<16x128xf32>
    %213 = arith.mulf %204, %190 : vector<16x128xf32>
    %214 = arith.mulf %208, %195 : vector<16x128xf32>
    %215 = arith.addf %213, %214 : vector<16x128xf32>
    %216 = arith.mulf %212, %200 : vector<16x128xf32>
    %217 = arith.addf %215, %216 : vector<16x128xf32>
    %c0_107 = arith.constant 0 : index
    %c0_108 = arith.constant 0 : index
    %c0_109 = arith.constant 0 : index
    %c0_110 = arith.constant 0 : index
    %218 = vector.load %arg5[%c0_107, %c0_108, %c0_109, %c0_110] : memref<9x1x16x128xf32, #tpu.memory_space<vmem>>, vector<1x1x16x128xf32>
    %219 = vector.shape_cast %218 : vector<1x1x16x128xf32> to vector<16x128xf32>
    %220 = vector.shape_cast %217 : vector<16x128xf32> to vector<1x1x16x128xf32>
    tpu.vector_store %arg5[%c0_107, %c0_108, %c0_109, %c0_110], %220 {strides = array<i32>} : memref<9x1x16x128xf32, #tpu.memory_space<vmem>>, vector<1x1x16x128xf32>,
    %c1_111 = arith.constant 1 : index
    %c0_112 = arith.constant 0 : index
    %c0_113 = arith.constant 0 : index
    %221 = vector.load %arg3[%c1_111, %c0_112, %c0_113] : memref<9x16x1xf32, #tpu.memory_space<vmem>>, vector<1x16x1xf32>
    %222 = vector.shape_cast %221 : vector<1x16x1xf32> to vector<16x1xf32>
    %223 = vector.shape_cast %222 : vector<16x1xf32> to vector<16x1xf32>
    %224 = vector.broadcast %223 : vector<16x1xf32> to vector<16x128xf32>
    %c4_114 = arith.constant 4 : index
    %c0_115 = arith.constant 0 : index
    %c0_116 = arith.constant 0 : index
    %225 = vector.load %arg3[%c4_114, %c0_115, %c0_116] : memref<9x16x1xf32, #tpu.memory_space<vmem>>, vector<1x16x1xf32>
    %226 = vector.shape_cast %225 : vector<1x16x1xf32> to vector<16x1xf32>
    %227 = vector.shape_cast %226 : vector<16x1xf32> to vector<16x1xf32>
    %228 = vector.broadcast %227 : vector<16x1xf32> to vector<16x128xf32>
    %c7_117 = arith.constant 7 : index
    %c0_118 = arith.constant 0 : index
    %c0_119 = arith.constant 0 : index
    %229 = vector.load %arg3[%c7_117, %c0_118, %c0_119] : memref<9x16x1xf32, #tpu.memory_space<vmem>>, vector<1x16x1xf32>
    %230 = vector.shape_cast %229 : vector<1x16x1xf32> to vector<16x1xf32>
    %231 = vector.shape_cast %230 : vector<16x1xf32> to vector<16x1xf32>
    %232 = vector.broadcast %231 : vector<16x1xf32> to vector<16x128xf32>
    %233 = arith.mulf %224, %190 : vector<16x128xf32>
    %234 = arith.mulf %228, %195 : vector<16x128xf32>
    %235 = arith.addf %233, %234 : vector<16x128xf32>
    %236 = arith.mulf %232, %200 : vector<16x128xf32>
    %237 = arith.addf %235, %236 : vector<16x128xf32>
    %c3_120 = arith.constant 3 : index
    %c0_121 = arith.constant 0 : index
    %c0_122 = arith.constant 0 : index
    %c0_123 = arith.constant 0 : index
    %238 = vector.load %arg5[%c3_120, %c0_121, %c0_122, %c0_123] : memref<9x1x16x128xf32, #tpu.memory_space<vmem>>, vector<1x1x16x128xf32>
    %239 = vector.shape_cast %238 : vector<1x1x16x128xf32> to vector<16x128xf32>
    %240 = vector.shape_cast %237 : vector<16x128xf32> to vector<1x1x16x128xf32>
    tpu.vector_store %arg5[%c3_120, %c0_121, %c0_122, %c0_123], %240 {strides = array<i32>} : memref<9x1x16x128xf32, #tpu.memory_space<vmem>>, vector<1x1x16x128xf32>,
    %c2_124 = arith.constant 2 : index
    %c0_125 = arith.constant 0 : index
    %c0_126 = arith.constant 0 : index
    %241 = vector.load %arg3[%c2_124, %c0_125, %c0_126] : memref<9x16x1xf32, #tpu.memory_space<vmem>>, vector<1x16x1xf32>
    %242 = vector.shape_cast %241 : vector<1x16x1xf32> to vector<16x1xf32>
    %243 = vector.shape_cast %242 : vector<16x1xf32> to vector<16x1xf32>
    %244 = vector.broadcast %243 : vector<16x1xf32> to vector<16x128xf32>
    %c5_127 = arith.constant 5 : index
    %c0_128 = arith.constant 0 : index
    %c0_129 = arith.constant 0 : index
    %245 = vector.load %arg3[%c5_127, %c0_128, %c0_129] : memref<9x16x1xf32, #tpu.memory_space<vmem>>, vector<1x16x1xf32>
    %246 = vector.shape_cast %245 : vector<1x16x1xf32> to vector<16x1xf32>
    %247 = vector.shape_cast %246 : vector<16x1xf32> to vector<16x1xf32>
    %248 = vector.broadcast %247 : vector<16x1xf32> to vector<16x128xf32>
    %c8_130 = arith.constant 8 : index
    %c0_131 = arith.constant 0 : index
    %c0_132 = arith.constant 0 : index
    %249 = vector.load %arg3[%c8_130, %c0_131, %c0_132] : memref<9x16x1xf32, #tpu.memory_space<vmem>>, vector<1x16x1xf32>
    %250 = vector.shape_cast %249 : vector<1x16x1xf32> to vector<16x1xf32>
    %251 = vector.shape_cast %250 : vector<16x1xf32> to vector<16x1xf32>
    %252 = vector.broadcast %251 : vector<16x1xf32> to vector<16x128xf32>
    %253 = arith.mulf %244, %190 : vector<16x128xf32>
    %254 = arith.mulf %248, %195 : vector<16x128xf32>
    %255 = arith.addf %253, %254 : vector<16x128xf32>
    %256 = arith.mulf %252, %200 : vector<16x128xf32>
    %257 = arith.addf %255, %256 : vector<16x128xf32>
    %c6_133 = arith.constant 6 : index
    %c0_134 = arith.constant 0 : index
    %c0_135 = arith.constant 0 : index
    %c0_136 = arith.constant 0 : index
    %258 = vector.load %arg5[%c6_133, %c0_134, %c0_135, %c0_136] : memref<9x1x16x128xf32, #tpu.memory_space<vmem>>, vector<1x1x16x128xf32>
    %259 = vector.shape_cast %258 : vector<1x1x16x128xf32> to vector<16x128xf32>
    %260 = vector.shape_cast %257 : vector<16x128xf32> to vector<1x1x16x128xf32>
    tpu.vector_store %arg5[%c6_133, %c0_134, %c0_135, %c0_136], %260 {strides = array<i32>} : memref<9x1x16x128xf32, #tpu.memory_space<vmem>>, vector<1x1x16x128xf32>,
    %261 = arith.mulf %145, %69 : vector<16x128xf32>
    %262 = arith.mulf %160, %99 : vector<16x128xf32>
    %263 = arith.addf %261, %262 : vector<16x128xf32>
    %264 = arith.mulf %175, %129 : vector<16x128xf32>
    %265 = arith.addf %263, %264 : vector<16x128xf32>
    %266 = arith.mulf %150, %69 : vector<16x128xf32>
    %267 = arith.mulf %165, %99 : vector<16x128xf32>
    %268 = arith.addf %266, %267 : vector<16x128xf32>
    %269 = arith.mulf %180, %129 : vector<16x128xf32>
    %270 = arith.addf %268, %269 : vector<16x128xf32>
    %271 = arith.mulf %155, %69 : vector<16x128xf32>
    %272 = arith.mulf %170, %99 : vector<16x128xf32>
    %273 = arith.addf %271, %272 : vector<16x128xf32>
    %274 = arith.mulf %185, %129 : vector<16x128xf32>
    %275 = arith.addf %273, %274 : vector<16x128xf32>
    %c0_137 = arith.constant 0 : index
    %c0_138 = arith.constant 0 : index
    %c0_139 = arith.constant 0 : index
    %276 = vector.load %arg3[%c0_137, %c0_138, %c0_139] : memref<9x16x1xf32, #tpu.memory_space<vmem>>, vector<1x16x1xf32>
    %277 = vector.shape_cast %276 : vector<1x16x1xf32> to vector<16x1xf32>
    %278 = vector.shape_cast %277 : vector<16x1xf32> to vector<16x1xf32>
    %279 = vector.broadcast %278 : vector<16x1xf32> to vector<16x128xf32>
    %c3_140 = arith.constant 3 : index
    %c0_141 = arith.constant 0 : index
    %c0_142 = arith.constant 0 : index
    %280 = vector.load %arg3[%c3_140, %c0_141, %c0_142] : memref<9x16x1xf32, #tpu.memory_space<vmem>>, vector<1x16x1xf32>
    %281 = vector.shape_cast %280 : vector<1x16x1xf32> to vector<16x1xf32>
    %282 = vector.shape_cast %281 : vector<16x1xf32> to vector<16x1xf32>
    %283 = vector.broadcast %282 : vector<16x1xf32> to vector<16x128xf32>
    %c6_143 = arith.constant 6 : index
    %c0_144 = arith.constant 0 : index
    %c0_145 = arith.constant 0 : index
    %284 = vector.load %arg3[%c6_143, %c0_144, %c0_145] : memref<9x16x1xf32, #tpu.memory_space<vmem>>, vector<1x16x1xf32>
    %285 = vector.shape_cast %284 : vector<1x16x1xf32> to vector<16x1xf32>
    %286 = vector.shape_cast %285 : vector<16x1xf32> to vector<16x1xf32>
    %287 = vector.broadcast %286 : vector<16x1xf32> to vector<16x128xf32>
    %288 = arith.mulf %279, %265 : vector<16x128xf32>
    %289 = arith.mulf %283, %270 : vector<16x128xf32>
    %290 = arith.addf %288, %289 : vector<16x128xf32>
    %291 = arith.mulf %287, %275 : vector<16x128xf32>
    %292 = arith.addf %290, %291 : vector<16x128xf32>
    %c1_146 = arith.constant 1 : index
    %c0_147 = arith.constant 0 : index
    %c0_148 = arith.constant 0 : index
    %c0_149 = arith.constant 0 : index
    %293 = vector.load %arg5[%c1_146, %c0_147, %c0_148, %c0_149] : memref<9x1x16x128xf32, #tpu.memory_space<vmem>>, vector<1x1x16x128xf32>
    %294 = vector.shape_cast %293 : vector<1x1x16x128xf32> to vector<16x128xf32>
    %295 = vector.shape_cast %292 : vector<16x128xf32> to vector<1x1x16x128xf32>
    tpu.vector_store %arg5[%c1_146, %c0_147, %c0_148, %c0_149], %295 {strides = array<i32>} : memref<9x1x16x128xf32, #tpu.memory_space<vmem>>, vector<1x1x16x128xf32>,
    %c1_150 = arith.constant 1 : index
    %c0_151 = arith.constant 0 : index
    %c0_152 = arith.constant 0 : index
    %296 = vector.load %arg3[%c1_150, %c0_151, %c0_152] : memref<9x16x1xf32, #tpu.memory_space<vmem>>, vector<1x16x1xf32>
    %297 = vector.shape_cast %296 : vector<1x16x1xf32> to vector<16x1xf32>
    %298 = vector.shape_cast %297 : vector<16x1xf32> to vector<16x1xf32>
    %299 = vector.broadcast %298 : vector<16x1xf32> to vector<16x128xf32>
    %c4_153 = arith.constant 4 : index
    %c0_154 = arith.constant 0 : index
    %c0_155 = arith.constant 0 : index
    %300 = vector.load %arg3[%c4_153, %c0_154, %c0_155] : memref<9x16x1xf32, #tpu.memory_space<vmem>>, vector<1x16x1xf32>
    %301 = vector.shape_cast %300 : vector<1x16x1xf32> to vector<16x1xf32>
    %302 = vector.shape_cast %301 : vector<16x1xf32> to vector<16x1xf32>
    %303 = vector.broadcast %302 : vector<16x1xf32> to vector<16x128xf32>
    %c7_156 = arith.constant 7 : index
    %c0_157 = arith.constant 0 : index
    %c0_158 = arith.constant 0 : index
    %304 = vector.load %arg3[%c7_156, %c0_157, %c0_158] : memref<9x16x1xf32, #tpu.memory_space<vmem>>, vector<1x16x1xf32>
    %305 = vector.shape_cast %304 : vector<1x16x1xf32> to vector<16x1xf32>
    %306 = vector.shape_cast %305 : vector<16x1xf32> to vector<16x1xf32>
    %307 = vector.broadcast %306 : vector<16x1xf32> to vector<16x128xf32>
    %308 = arith.mulf %299, %265 : vector<16x128xf32>
    %309 = arith.mulf %303, %270 : vector<16x128xf32>
    %310 = arith.addf %308, %309 : vector<16x128xf32>
    %311 = arith.mulf %307, %275 : vector<16x128xf32>
    %312 = arith.addf %310, %311 : vector<16x128xf32>
    %c4_159 = arith.constant 4 : index
    %c0_160 = arith.constant 0 : index
    %c0_161 = arith.constant 0 : index
    %c0_162 = arith.constant 0 : index
    %313 = vector.load %arg5[%c4_159, %c0_160, %c0_161, %c0_162] : memref<9x1x16x128xf32, #tpu.memory_space<vmem>>, vector<1x1x16x128xf32>
    %314 = vector.shape_cast %313 : vector<1x1x16x128xf32> to vector<16x128xf32>
    %315 = vector.shape_cast %312 : vector<16x128xf32> to vector<1x1x16x128xf32>
    tpu.vector_store %arg5[%c4_159, %c0_160, %c0_161, %c0_162], %315 {strides = array<i32>} : memref<9x1x16x128xf32, #tpu.memory_space<vmem>>, vector<1x1x16x128xf32>,
    %c2_163 = arith.constant 2 : index
    %c0_164 = arith.constant 0 : index
    %c0_165 = arith.constant 0 : index
    %316 = vector.load %arg3[%c2_163, %c0_164, %c0_165] : memref<9x16x1xf32, #tpu.memory_space<vmem>>, vector<1x16x1xf32>
    %317 = vector.shape_cast %316 : vector<1x16x1xf32> to vector<16x1xf32>
    %318 = vector.shape_cast %317 : vector<16x1xf32> to vector<16x1xf32>
    %319 = vector.broadcast %318 : vector<16x1xf32> to vector<16x128xf32>
    %c5_166 = arith.constant 5 : index
    %c0_167 = arith.constant 0 : index
    %c0_168 = arith.constant 0 : index
    %320 = vector.load %arg3[%c5_166, %c0_167, %c0_168] : memref<9x16x1xf32, #tpu.memory_space<vmem>>, vector<1x16x1xf32>
    %321 = vector.shape_cast %320 : vector<1x16x1xf32> to vector<16x1xf32>
    %322 = vector.shape_cast %321 : vector<16x1xf32> to vector<16x1xf32>
    %323 = vector.broadcast %322 : vector<16x1xf32> to vector<16x128xf32>
    %c8_169 = arith.constant 8 : index
    %c0_170 = arith.constant 0 : index
    %c0_171 = arith.constant 0 : index
    %324 = vector.load %arg3[%c8_169, %c0_170, %c0_171] : memref<9x16x1xf32, #tpu.memory_space<vmem>>, vector<1x16x1xf32>
    %325 = vector.shape_cast %324 : vector<1x16x1xf32> to vector<16x1xf32>
    %326 = vector.shape_cast %325 : vector<16x1xf32> to vector<16x1xf32>
    %327 = vector.broadcast %326 : vector<16x1xf32> to vector<16x128xf32>
    %328 = arith.mulf %319, %265 : vector<16x128xf32>
    %329 = arith.mulf %323, %270 : vector<16x128xf32>
    %330 = arith.addf %328, %329 : vector<16x128xf32>
    %331 = arith.mulf %327, %275 : vector<16x128xf32>
    %332 = arith.addf %330, %331 : vector<16x128xf32>
    %c7_172 = arith.constant 7 : index
    %c0_173 = arith.constant 0 : index
    %c0_174 = arith.constant 0 : index
    %c0_175 = arith.constant 0 : index
    %333 = vector.load %arg5[%c7_172, %c0_173, %c0_174, %c0_175] : memref<9x1x16x128xf32, #tpu.memory_space<vmem>>, vector<1x1x16x128xf32>
    %334 = vector.shape_cast %333 : vector<1x1x16x128xf32> to vector<16x128xf32>
    %335 = vector.shape_cast %332 : vector<16x128xf32> to vector<1x1x16x128xf32>
    tpu.vector_store %arg5[%c7_172, %c0_173, %c0_174, %c0_175], %335 {strides = array<i32>} : memref<9x1x16x128xf32, #tpu.memory_space<vmem>>, vector<1x1x16x128xf32>,
    %336 = arith.mulf %145, %77 : vector<16x128xf32>
    %337 = arith.mulf %160, %107 : vector<16x128xf32>
    %338 = arith.addf %336, %337 : vector<16x128xf32>
    %339 = arith.mulf %175, %137 : vector<16x128xf32>
    %340 = arith.addf %338, %339 : vector<16x128xf32>
    %341 = arith.mulf %150, %77 : vector<16x128xf32>
    %342 = arith.mulf %165, %107 : vector<16x128xf32>
    %343 = arith.addf %341, %342 : vector<16x128xf32>
    %344 = arith.mulf %180, %137 : vector<16x128xf32>
    %345 = arith.addf %343, %344 : vector<16x128xf32>
    %346 = arith.mulf %155, %77 : vector<16x128xf32>
    %347 = arith.mulf %170, %107 : vector<16x128xf32>
    %348 = arith.addf %346, %347 : vector<16x128xf32>
    %349 = arith.mulf %185, %137 : vector<16x128xf32>
    %350 = arith.addf %348, %349 : vector<16x128xf32>
    %c0_176 = arith.constant 0 : index
    %c0_177 = arith.constant 0 : index
    %c0_178 = arith.constant 0 : index
    %351 = vector.load %arg3[%c0_176, %c0_177, %c0_178] : memref<9x16x1xf32, #tpu.memory_space<vmem>>, vector<1x16x1xf32>
    %352 = vector.shape_cast %351 : vector<1x16x1xf32> to vector<16x1xf32>
    %353 = vector.shape_cast %352 : vector<16x1xf32> to vector<16x1xf32>
    %354 = vector.broadcast %353 : vector<16x1xf32> to vector<16x128xf32>
    %c3_179 = arith.constant 3 : index
    %c0_180 = arith.constant 0 : index
    %c0_181 = arith.constant 0 : index
    %355 = vector.load %arg3[%c3_179, %c0_180, %c0_181] : memref<9x16x1xf32, #tpu.memory_space<vmem>>, vector<1x16x1xf32>
    %356 = vector.shape_cast %355 : vector<1x16x1xf32> to vector<16x1xf32>
    %357 = vector.shape_cast %356 : vector<16x1xf32> to vector<16x1xf32>
    %358 = vector.broadcast %357 : vector<16x1xf32> to vector<16x128xf32>
    %c6_182 = arith.constant 6 : index
    %c0_183 = arith.constant 0 : index
    %c0_184 = arith.constant 0 : index
    %359 = vector.load %arg3[%c6_182, %c0_183, %c0_184] : memref<9x16x1xf32, #tpu.memory_space<vmem>>, vector<1x16x1xf32>
    %360 = vector.shape_cast %359 : vector<1x16x1xf32> to vector<16x1xf32>
    %361 = vector.shape_cast %360 : vector<16x1xf32> to vector<16x1xf32>
    %362 = vector.broadcast %361 : vector<16x1xf32> to vector<16x128xf32>
    %363 = arith.mulf %354, %340 : vector<16x128xf32>
    %364 = arith.mulf %358, %345 : vector<16x128xf32>
    %365 = arith.addf %363, %364 : vector<16x128xf32>
    %366 = arith.mulf %362, %350 : vector<16x128xf32>
    %367 = arith.addf %365, %366 : vector<16x128xf32>
    %c2_185 = arith.constant 2 : index
    %c0_186 = arith.constant 0 : index
    %c0_187 = arith.constant 0 : index
    %c0_188 = arith.constant 0 : index
    %368 = vector.load %arg5[%c2_185, %c0_186, %c0_187, %c0_188] : memref<9x1x16x128xf32, #tpu.memory_space<vmem>>, vector<1x1x16x128xf32>
    %369 = vector.shape_cast %368 : vector<1x1x16x128xf32> to vector<16x128xf32>
    %370 = vector.shape_cast %367 : vector<16x128xf32> to vector<1x1x16x128xf32>
    tpu.vector_store %arg5[%c2_185, %c0_186, %c0_187, %c0_188], %370 {strides = array<i32>} : memref<9x1x16x128xf32, #tpu.memory_space<vmem>>, vector<1x1x16x128xf32>,
    %c1_189 = arith.constant 1 : index
    %c0_190 = arith.constant 0 : index
    %c0_191 = arith.constant 0 : index
    %371 = vector.load %arg3[%c1_189, %c0_190, %c0_191] : memref<9x16x1xf32, #tpu.memory_space<vmem>>, vector<1x16x1xf32>
    %372 = vector.shape_cast %371 : vector<1x16x1xf32> to vector<16x1xf32>
    %373 = vector.shape_cast %372 : vector<16x1xf32> to vector<16x1xf32>
    %374 = vector.broadcast %373 : vector<16x1xf32> to vector<16x128xf32>
    %c4_192 = arith.constant 4 : index
    %c0_193 = arith.constant 0 : index
    %c0_194 = arith.constant 0 : index
    %375 = vector.load %arg3[%c4_192, %c0_193, %c0_194] : memref<9x16x1xf32, #tpu.memory_space<vmem>>, vector<1x16x1xf32>
    %376 = vector.shape_cast %375 : vector<1x16x1xf32> to vector<16x1xf32>
    %377 = vector.shape_cast %376 : vector<16x1xf32> to vector<16x1xf32>
    %378 = vector.broadcast %377 : vector<16x1xf32> to vector<16x128xf32>
    %c7_195 = arith.constant 7 : index
    %c0_196 = arith.constant 0 : index
    %c0_197 = arith.constant 0 : index
    %379 = vector.load %arg3[%c7_195, %c0_196, %c0_197] : memref<9x16x1xf32, #tpu.memory_space<vmem>>, vector<1x16x1xf32>
    %380 = vector.shape_cast %379 : vector<1x16x1xf32> to vector<16x1xf32>
    %381 = vector.shape_cast %380 : vector<16x1xf32> to vector<16x1xf32>
    %382 = vector.broadcast %381 : vector<16x1xf32> to vector<16x128xf32>
    %383 = arith.mulf %374, %340 : vector<16x128xf32>
    %384 = arith.mulf %378, %345 : vector<16x128xf32>
    %385 = arith.addf %383, %384 : vector<16x128xf32>
    %386 = arith.mulf %382, %350 : vector<16x128xf32>
    %387 = arith.addf %385, %386 : vector<16x128xf32>
    %c5_198 = arith.constant 5 : index
    %c0_199 = arith.constant 0 : index
    %c0_200 = arith.constant 0 : index
    %c0_201 = arith.constant 0 : index
    %388 = vector.load %arg5[%c5_198, %c0_199, %c0_200, %c0_201] : memref<9x1x16x128xf32, #tpu.memory_space<vmem>>, vector<1x1x16x128xf32>
    %389 = vector.shape_cast %388 : vector<1x1x16x128xf32> to vector<16x128xf32>
    %390 = vector.shape_cast %387 : vector<16x128xf32> to vector<1x1x16x128xf32>
    tpu.vector_store %arg5[%c5_198, %c0_199, %c0_200, %c0_201], %390 {strides = array<i32>} : memref<9x1x16x128xf32, #tpu.memory_space<vmem>>, vector<1x1x16x128xf32>,
    %c2_202 = arith.constant 2 : index
    %c0_203 = arith.constant 0 : index
    %c0_204 = arith.constant 0 : index
    %391 = vector.load %arg3[%c2_202, %c0_203, %c0_204] : memref<9x16x1xf32, #tpu.memory_space<vmem>>, vector<1x16x1xf32>
    %392 = vector.shape_cast %391 : vector<1x16x1xf32> to vector<16x1xf32>
    %393 = vector.shape_cast %392 : vector<16x1xf32> to vector<16x1xf32>
    %394 = vector.broadcast %393 : vector<16x1xf32> to vector<16x128xf32>
    %c5_205 = arith.constant 5 : index
    %c0_206 = arith.constant 0 : index
    %c0_207 = arith.constant 0 : index
    %395 = vector.load %arg3[%c5_205, %c0_206, %c0_207] : memref<9x16x1xf32, #tpu.memory_space<vmem>>, vector<1x16x1xf32>
    %396 = vector.shape_cast %395 : vector<1x16x1xf32> to vector<16x1xf32>
    %397 = vector.shape_cast %396 : vector<16x1xf32> to vector<16x1xf32>
    %398 = vector.broadcast %397 : vector<16x1xf32> to vector<16x128xf32>
    %c8_208 = arith.constant 8 : index
    %c0_209 = arith.constant 0 : index
    %c0_210 = arith.constant 0 : index
    %399 = vector.load %arg3[%c8_208, %c0_209, %c0_210] : memref<9x16x1xf32, #tpu.memory_space<vmem>>, vector<1x16x1xf32>
    %400 = vector.shape_cast %399 : vector<1x16x1xf32> to vector<16x1xf32>
    %401 = vector.shape_cast %400 : vector<16x1xf32> to vector<16x1xf32>
    %402 = vector.broadcast %401 : vector<16x1xf32> to vector<16x128xf32>
    %403 = arith.mulf %394, %340 : vector<16x128xf32>
    %404 = arith.mulf %398, %345 : vector<16x128xf32>
    %405 = arith.addf %403, %404 : vector<16x128xf32>
    %406 = arith.mulf %402, %350 : vector<16x128xf32>
    %407 = arith.addf %405, %406 : vector<16x128xf32>
    %c8_211 = arith.constant 8 : index
    %c0_212 = arith.constant 0 : index
    %c0_213 = arith.constant 0 : index
    %c0_214 = arith.constant 0 : index
    %408 = vector.load %arg5[%c8_211, %c0_212, %c0_213, %c0_214] : memref<9x1x16x128xf32, #tpu.memory_space<vmem>>, vector<1x1x16x128xf32>
    %409 = vector.shape_cast %408 : vector<1x1x16x128xf32> to vector<16x128xf32>
    %410 = vector.shape_cast %407 : vector<16x128xf32> to vector<1x1x16x128xf32>
    tpu.vector_store %arg5[%c8_211, %c0_212, %c0_213, %c0_214], %410 {strides = array<i32>} : memref<9x1x16x128xf32, #tpu.memory_space<vmem>>, vector<1x1x16x128xf32>,
    return
  }
  func.func @transform_0(%arg0: i32) -> (i32, i32, i32, i32) {
    %c0_i32 = arith.constant 0 : i32
    %c0_i32_0 = arith.constant 0 : i32
    %c0_i32_1 = arith.constant 0 : i32
    %c0_i32_2 = arith.constant 0 : i32
    return %c0_i32, %arg0, %c0_i32_0, %c0_i32_1 : i32, i32, i32, i32
  }
  func.func @transform_1(%arg0: i32) -> (i32, i32, i32) {
    %c0_i32 = arith.constant 0 : i32
    %c0_i32_0 = arith.constant 0 : i32
    %c0_i32_1 = arith.constant 0 : i32
    %c0_i32_2 = arith.constant 0 : i32
    return %c0_i32, %c0_i32_0, %c0_i32_1 : i32, i32, i32
  }
  func.func @transform_2(%arg0: i32) -> (i32, i32, i32) {
    %c0_i32 = arith.constant 0 : i32
    %c0_i32_0 = arith.constant 0 : i32
    %c0_i32_1 = arith.constant 0 : i32
    %c0_i32_2 = arith.constant 0 : i32
    return %c0_i32, %c0_i32_0, %c0_i32_1 : i32, i32, i32
  }
  func.func @transform_3(%arg0: i32) -> (i32, i32, i32, i32) {
    %c0_i32 = arith.constant 0 : i32
    %c0_i32_0 = arith.constant 0 : i32
    %c0_i32_1 = arith.constant 0 : i32
    %c0_i32_2 = arith.constant 0 : i32
    return %c0_i32, %arg0, %c0_i32_0, %c0_i32_1 : i32, i32, i32, i32
  }
  func.func @transform_4(%arg0: i32) -> (i32, i32, i32, i32) {
    %c0_i32 = arith.constant 0 : i32
    %c0_i32_0 = arith.constant 0 : i32
    %c0_i32_1 = arith.constant 0 : i32
    %c0_i32_2 = arith.constant 0 : i32
    return %c0_i32, %arg0, %c0_i32_0, %c0_i32_1 : i32, i32, i32, i32
  }
}

</mosaic_0001>

<llo_original>
// kernel: a_call__.1
$region0: #{a_call__.1}
  #allocation0 [shape = 'u32[]', space=smem, size = 0x4, offset = 0x4, fixed_abs, tag = 'smem constant byte address 0x4 - core index']
  #allocation1 [shape = 'u32[144,128]{1,0:T(1,128)}', space=vmem, size = 0x12000, scoped, tag = 'internal scratch']
  %s0 = inlined_call_operand.vmem [shape: f32[9,1,16,128], index: 0, kind: input, shape index: {}]
  %s1 = inlined_call_operand.vmem [shape: f32[9,16,1], index: 1, kind: input, shape index: {}]
  %s2 = inlined_call_operand.vmem [shape: f32[9,16,1], index: 2, kind: input, shape index: {}]
  %s3 = inlined_call_operand.vmem [shape: f32[9,1,16,128], index: 3, kind: output, shape index: {0}]
  %s4 = inlined_call_operand.vmem [shape: f32[9,1,16,128], index: 4, kind: output, shape index: {1}]
  %5 = xla_tuple %s3, %s4
  %s6 = sld [smem:[#allocation0]]
  $region30: #{a_call__.1} parent=0
    _
  %s8 = ssub.s32 1, %s6
  %s9 = scalar_select 0, %s8, %s6
  // Predicated region
  $region2: #{a_call__.1} parent=0 // pred_check
    _
  $region3: #{a_call__.1} parent=0 // pred_check_branch
    %11 = sbr.rel (0) target = $region5
  $region4: #{a_call__.1} parent=0 // pred_region
    _
  $region5: #{a_call__.1} parent=0 // pred_fallthru
    _
  // Predicated region
  $region6: #{a_call__.1} parent=0 // pred_check
    _
  $region7: #{a_call__.1} parent=0 // pred_check_branch
    %13 = sbr.rel (0) target = $region9
  $region8: #{a_call__.1} parent=0 // pred_region
    _
  $region9: #{a_call__.1} parent=0 // pred_fallthru
    _
  // Predicated region
  $region10: #{a_call__.1} parent=0 // pred_check
    _
  $region11: #{a_call__.1} parent=0 // pred_check_branch
    %15 = sbr.rel (0) target = $region13
  $region12: #{a_call__.1} parent=0 // pred_region
    _
  $region13: #{a_call__.1} parent=0 // pred_fallthru
    _
  %v16 = vlaneseq
  %v17 = vshrl.u32 %v16, 7
  %v18 = vadd.s32 %v17, 8
  %vm19 = vcmp.eq.s32.totalorder %v17, 0
  %vm20 = vcmp.eq.s32.totalorder %v18, 0
  %vm21 = vcmp.eq.s32.totalorder %v17, 4
  %vm22 = vcmp.eq.s32.totalorder %v18, 4
  %vm23 = vmor %vm19, %vm21
  %vm24 = vmor %vm20, %vm22
  %vm25 = vcmp.eq.s32.totalorder %v17, 7
  %vm26 = vcmp.eq.s32.totalorder %v18, 7
  %vm27 = vmor %vm23, %vm25
  %vm28 = vmor %vm24, %vm26
  %vm29 = vcmp.eq.s32.totalorder %v17, 10
  %vm30 = vcmp.eq.s32.totalorder %v18, 10
  %vm31 = vmor %vm27, %vm29
  %vm32 = vmor %vm28, %vm30
  %vm33 = vcmp.eq.s32.totalorder %v17, 13
  %vm34 = vcmp.eq.s32.totalorder %v18, 13
  %vm35 = vmor %vm31, %vm33
  %vm36 = vmor %vm32, %vm34
  %v37 = vld [vmem:[%s1] sm:$0xff]
  %v38 = vld [vmem:[%s1 + $0x8] sm:$0xff]
  %40 = vset.pattern.permute.xlu0 0
  %41 = vperm.xlu0 %40, %v37
  %v42 = vpop.permute.xlu0 %41
  %45 = vset.pattern.permute.xlu0 0
  %46 = vperm.xlu0 %45, %v38
  %v47 = vpop.permute.xlu0 %46
  %s49 = scalar_lea.vmem %s1, 16
  %v50 = vld [vmem:[%s49] sm:$0xff]
  %v51 = vld [vmem:[%s49 + $0x8] sm:$0xff]
  %53 = vset.pattern.permute.xlu0 0
  %54 = vperm.xlu0 %53, %v50
  %v55 = vpop.permute.xlu0 %54
  %58 = vset.pattern.permute.xlu0 0
  %59 = vperm.xlu0 %58, %v51
  %v60 = vpop.permute.xlu0 %59
  %s62 = scalar_lea.vmem %s1, 32
  %v63 = vld [vmem:[%s62] sm:$0xff]
  %v64 = vld [vmem:[%s62 + $0x8] sm:$0xff]
  %66 = vset.pattern.permute.xlu0 0
  %67 = vperm.xlu0 %66, %v63
  %v68 = vpop.permute.xlu0 %67
  %71 = vset.pattern.permute.xlu0 0
  %72 = vperm.xlu0 %71, %v64
  %v73 = vpop.permute.xlu0 %72
  %s75 = scalar_lea.vmem %s1, 48
  %v76 = vld [vmem:[%s75] sm:$0xff]
  %v77 = vld [vmem:[%s75 + $0x8] sm:$0xff]
  %79 = vset.pattern.permute.xlu0 0
  %80 = vperm.xlu0 %79, %v76
  %v81 = vpop.permute.xlu0 %80
  %84 = vset.pattern.permute.xlu0 0
  %85 = vperm.xlu0 %84, %v77
  %v86 = vpop.permute.xlu0 %85
  %s88 = scalar_lea.vmem %s1, 64
  %v89 = vld [vmem:[%s88] sm:$0xff]
  %v90 = vld [vmem:[%s88 + $0x8] sm:$0xff]
  %92 = vset.pattern.permute.xlu0 0
  %93 = vperm.xlu0 %92, %v89
  %v94 = vpop.permute.xlu0 %93
  %97 = vset.pattern.permute.xlu0 0
  %98 = vperm.xlu0 %97, %v90
  %v99 = vpop.permute.xlu0 %98
  %s101 = scalar_lea.vmem %s1, 80
  %v102 = vld [vmem:[%s101] sm:$0xff]
  %v103 = vld [vmem:[%s101 + $0x8] sm:$0xff]
  %105 = vset.pattern.permute.xlu0 0
  %106 = vperm.xlu0 %105, %v102
  %v107 = vpop.permute.xlu0 %106
  %110 = vset.pattern.permute.xlu0 0
  %111 = vperm.xlu0 %110, %v103
  %v112 = vpop.permute.xlu0 %111
  %s114 = scalar_lea.vmem %s1, 96
  %v115 = vld [vmem:[%s114] sm:$0xff]
  %v116 = vld [vmem:[%s114 + $0x8] sm:$0xff]
  %118 = vset.pattern.permute.xlu0 0
  %119 = vperm.xlu0 %118, %v115
  %v120 = vpop.permute.xlu0 %119
  %123 = vset.pattern.permute.xlu0 0
  %124 = vperm.xlu0 %123, %v116
  %v125 = vpop.permute.xlu0 %124
  %s127 = scalar_lea.vmem %s1, 112
  %v128 = vld [vmem:[%s127] sm:$0xff]
  %v129 = vld [vmem:[%s127 + $0x8] sm:$0xff]
  %131 = vset.pattern.permute.xlu0 0
  %132 = vperm.xlu0 %131, %v128
  %v133 = vpop.permute.xlu0 %132
  %136 = vset.pattern.permute.xlu0 0
  %137 = vperm.xlu0 %136, %v129
  %v138 = vpop.permute.xlu0 %137
  %s140 = scalar_lea.vmem %s1, 128
  %v141 = vld [vmem:[%s140] sm:$0xff]
  %v142 = vld [vmem:[%s140 + $0x8] sm:$0xff]
  %144 = vset.pattern.permute.xlu0 0
  %145 = vperm.xlu0 %144, %v141
  %v146 = vpop.permute.xlu0 %145
  %149 = vset.pattern.permute.xlu0 0
  %150 = vperm.xlu0 %149, %v142
  %v151 = vpop.permute.xlu0 %150
  %v153 = vld [vmem:[%s0] sm:$0xff]
  %v154 = vld [vmem:[%s0 + $0x8] sm:$0xff]
  %s155 = scalar_lea.vmem %s0, 16
  %v156 = vld [vmem:[%s155] sm:$0xff]
  %v157 = vld [vmem:[%s155 + $0x8] sm:$0xff]
  %s158 = scalar_lea.vmem %s0, 32
  %v159 = vld [vmem:[%s158] sm:$0xff]
  %v160 = vld [vmem:[%s158 + $0x8] sm:$0xff]
  %v161 = vmul.f32 %v153, %v42
  %v162 = vmul.f32 %v154, %v47
  %v163 = vmul.f32 %v156, %v81
  %v164 = vmul.f32 %v157, %v86
  %v165 = vadd.f32 %v161, %v163
  %v166 = vadd.f32 %v162, %v164
  %v167 = vmul.f32 %v159, %v120
  %v168 = vmul.f32 %v160, %v125
  %v169 = vadd.f32 %v165, %v167
  %v170 = vadd.f32 %v166, %v168
  %171 = vst [vmem:[%s3] sm:$0xff] %v169
  %172 = vst [vmem:[%s3 + $0x8] sm:$0xff] %v170
  %v173 = vmul.f32 %v153, %v55
  %v174 = vmul.f32 %v154, %v60
  %v175 = vmul.f32 %v156, %v94
  %v176 = vmul.f32 %v157, %v99
  %v177 = vadd.f32 %v173, %v175
  %v178 = vadd.f32 %v174, %v176
  %v179 = vmul.f32 %v159, %v133
  %v180 = vmul.f32 %v160, %v138
  %v181 = vadd.f32 %v177, %v179
  %v182 = vadd.f32 %v178, %v180
  %s183 = scalar_lea.vmem %s3, 16
  %184 = vst [vmem:[%s183] sm:$0xff] %v181
  %185 = vst [vmem:[%s183 + $0x8] sm:$0xff] %v182
  %v186 = vmul.f32 %v153, %v68
  %v187 = vmul.f32 %v154, %v73
  %v188 = vmul.f32 %v156, %v107
  %v189 = vmul.f32 %v157, %v112
  %v190 = vadd.f32 %v186, %v188
  %v191 = vadd.f32 %v187, %v189
  %v192 = vmul.f32 %v159, %v146
  %v193 = vmul.f32 %v160, %v151
  %v194 = vadd.f32 %v190, %v192
  %v195 = vadd.f32 %v191, %v193
  %s196 = scalar_lea.vmem %s3, 32
  %197 = vst [vmem:[%s196] sm:$0xff] %v194
  %198 = vst [vmem:[%s196 + $0x8] sm:$0xff] %v195
  %s199 = scalar_lea.vmem %s0, 48
  %v200 = vld [vmem:[%s199] sm:$0xff]
  %v201 = vld [vmem:[%s199 + $0x8] sm:$0xff]
  %s202 = scalar_lea.vmem %s0, 64
  %v203 = vld [vmem:[%s202] sm:$0xff]
  %v204 = vld [vmem:[%s202 + $0x8] sm:$0xff]
  %s205 = scalar_lea.vmem %s0, 80
  %v206 = vld [vmem:[%s205] sm:$0xff]
  %v207 = vld [vmem:[%s205 + $0x8] sm:$0xff]
  %v208 = vmul.f32 %v200, %v42
  %v209 = vmul.f32 %v201, %v47
  %v210 = vmul.f32 %v203, %v81
  %v211 = vmul.f32 %v204, %v86
  %v212 = vadd.f32 %v208, %v210
  %v213 = vadd.f32 %v209, %v211
  %v214 = vmul.f32 %v206, %v120
  %v215 = vmul.f32 %v207, %v125
  %v216 = vadd.f32 %v212, %v214
  %v217 = vadd.f32 %v213, %v215
  %s218 = scalar_lea.vmem %s3, 48
  %219 = vst [vmem:[%s218] sm:$0xff] %v216
  %220 = vst [vmem:[%s218 + $0x8] sm:$0xff] %v217
  %v221 = vmul.f32 %v200, %v55
  %v222 = vmul.f32 %v201, %v60
  %v223 = vmul.f32 %v203, %v94
  %v224 = vmul.f32 %v204, %v99
  %v225 = vadd.f32 %v221, %v223
  %v226 = vadd.f32 %v222, %v224
  %v227 = vmul.f32 %v206, %v133
  %v228 = vmul.f32 %v207, %v138
  %v229 = vadd.f32 %v225, %v227
  %v230 = vadd.f32 %v226, %v228
  %s231 = scalar_lea.vmem %s3, 64
  %232 = vst [vmem:[%s231] sm:$0xff] %v229
  %233 = vst [vmem:[%s231 + $0x8] sm:$0xff] %v230
  %v234 = vmul.f32 %v200, %v68
  %v235 = vmul.f32 %v201, %v73
  %v236 = vmul.f32 %v203, %v107
  %v237 = vmul.f32 %v204, %v112
  %v238 = vadd.f32 %v234, %v236
  %v239 = vadd.f32 %v235, %v237
  %v240 = vmul.f32 %v206, %v146
  %v241 = vmul.f32 %v207, %v151
  %v242 = vadd.f32 %v238, %v240
  %v243 = vadd.f32 %v239, %v241
  %s244 = scalar_lea.vmem %s3, 80
  %245 = vst [vmem:[%s244] sm:$0xff] %v242
  %246 = vst [vmem:[%s244 + $0x8] sm:$0xff] %v243
  %s247 = scalar_lea.vmem %s0, 96
  %v248 = vld [vmem:[%s247] sm:$0xff]
  %v249 = vld [vmem:[%s247 + $0x8] sm:$0xff]
  %s250 = scalar_lea.vmem %s0, 112
  %v251 = vld [vmem:[%s250] sm:$0xff]
  %v252 = vld [vmem:[%s250 + $0x8] sm:$0xff]
  %s253 = scalar_lea.vmem %s0, 128
  %v254 = vld [vmem:[%s253] sm:$0xff]
  %v255 = vld [vmem:[%s253 + $0x8] sm:$0xff]
  %v256 = vmul.f32 %v248, %v42
  %v257 = vmul.f32 %v249, %v47
  %v258 = vmul.f32 %v251, %v81
  %v259 = vmul.f32 %v252, %v86
  %v260 = vadd.f32 %v256, %v258
  %v261 = vadd.f32 %v257, %v259
  %v262 = vmul.f32 %v254, %v120
  %v263 = vmul.f32 %v255, %v125
  %v264 = vadd.f32 %v260, %v262
  %v265 = vadd.f32 %v261, %v263
  %s266 = scalar_lea.vmem %s3, 96
  %267 = vst [vmem:[%s266] sm:$0xff] %v264
  %268 = vst [vmem:[%s266 + $0x8] sm:$0xff] %v265
  %v269 = vmul.f32 %v248, %v55
  %v270 = vmul.f32 %v249, %v60
  %v271 = vmul.f32 %v251, %v94
  %v272 = vmul.f32 %v252, %v99
  %v273 = vadd.f32 %v269, %v271
  %v274 = vadd.f32 %v270, %v272
  %v275 = vmul.f32 %v254, %v133
  %v276 = vmul.f32 %v255, %v138
  %v277 = vadd.f32 %v273, %v275
  %v278 = vadd.f32 %v274, %v276
  %s279 = scalar_lea.vmem %s3, 112
  %280 = vst [vmem:[%s279] sm:$0xff] %v277
  %281 = vst [vmem:[%s279 + $0x8] sm:$0xff] %v278
  %v282 = vmul.f32 %v248, %v68
  %v283 = vmul.f32 %v249, %v73
  %v284 = vmul.f32 %v251, %v107
  %v285 = vmul.f32 %v252, %v112
  %v286 = vadd.f32 %v282, %v284
  %v287 = vadd.f32 %v283, %v285
  %v288 = vmul.f32 %v254, %v146
  %v289 = vmul.f32 %v255, %v151
  %v290 = vadd.f32 %v286, %v288
  %v291 = vadd.f32 %v287, %v289
  %s292 = scalar_lea.vmem %s3, 128
  %293 = vst [vmem:[%s292] sm:$0xff] %v290
  %294 = vst [vmem:[%s292 + $0x8] sm:$0xff] %v291
  %v295 = vrot.slane %v169, 7
  %v296 = vrot.slane %v170, 7
  %vm297 = vcmp.lt.s32.totalorder %v17, 1
  %v298 = vsel %vm297, %v295, %v296
  %v299 = vsel %vm297, %v296, %v295
  %v300 = vlaneseq
  %v301 = vshrl.u32 %v300, 7
  %v302 = vsub.s32 0, %v301
  %v303 = vrot.slane %v169, %v302
  %v304 = vsel %vm35, %v303, %v299
  %v305 = vsel %vm36, %v303, %v298
  %v306 = vrot.slane %v181, 7
  %v307 = vrot.slane %v182, 7
  %v308 = vsel %vm297, %v306, %v307
  %v309 = vsel %vm297, %v307, %v306
  %v310 = vlaneseq
  %v311 = vshrl.u32 %v310, 7
  %v312 = vsub.s32 0, %v311
  %v313 = vrot.slane %v181, %v312
  %v314 = vsel %vm35, %v313, %v309
  %v315 = vsel %vm36, %v313, %v308
  %v316 = vrot.slane %v194, 7
  %v317 = vrot.slane %v195, 7
  %v318 = vsel %vm297, %v316, %v317
  %v319 = vsel %vm297, %v317, %v316
  %v320 = vlaneseq
  %v321 = vshrl.u32 %v320, 7
  %v322 = vsub.s32 0, %v321
  %v323 = vrot.slane %v194, %v322
  %v324 = vsel %vm35, %v323, %v319
  %v325 = vsel %vm36, %v323, %v318
  %v326 = vrot.slane %v216, 7
  %v327 = vrot.slane %v217, 7
  %v328 = vsel %vm297, %v326, %v327
  %v329 = vsel %vm297, %v327, %v326
  %v330 = vlaneseq
  %v331 = vshrl.u32 %v330, 7
  %v332 = vsub.s32 0, %v331
  %v333 = vrot.slane %v216, %v332
  %v334 = vsel %vm35, %v333, %v329
  %v335 = vsel %vm36, %v333, %v328
  %v336 = vrot.slane %v229, 7
  %v337 = vrot.slane %v230, 7
  %v338 = vsel %vm297, %v336, %v337
  %v339 = vsel %vm297, %v337, %v336
  %v340 = vlaneseq
  %v341 = vshrl.u32 %v340, 7
  %v342 = vsub.s32 0, %v341
  %v343 = vrot.slane %v229, %v342
  %v344 = vsel %vm35, %v343, %v339
  %v345 = vsel %vm36, %v343, %v338
  %v346 = vrot.slane %v242, 7
  %v347 = vrot.slane %v243, 7
  %v348 = vsel %vm297, %v346, %v347
  %v349 = vsel %vm297, %v347, %v346
  %v350 = vlaneseq
  %v351 = vshrl.u32 %v350, 7
  %v352 = vsub.s32 0, %v351
  %v353 = vrot.slane %v242, %v352
  %v354 = vsel %vm35, %v353, %v349
  %v355 = vsel %vm36, %v353, %v348
  %v356 = vrot.slane %v264, 7
  %v357 = vrot.slane %v265, 7
  %v358 = vsel %vm297, %v356, %v357
  %v359 = vsel %vm297, %v357, %v356
  %v360 = vlaneseq
  %v361 = vshrl.u32 %v360, 7
  %v362 = vsub.s32 0, %v361
  %v363 = vrot.slane %v264, %v362
  %v364 = vsel %vm35, %v363, %v359
  %v365 = vsel %vm36, %v363, %v358
  %v366 = vrot.slane %v277, 7
  %v367 = vrot.slane %v278, 7
  %v368 = vsel %vm297, %v366, %v367
  %v369 = vsel %vm297, %v367, %v366
  %v370 = vlaneseq
  %v371 = vshrl.u32 %v370, 7
  %v372 = vsub.s32 0, %v371
  %v373 = vrot.slane %v277, %v372
  %v374 = vsel %vm35, %v373, %v369
  %v375 = vsel %vm36, %v373, %v368
  %v376 = vrot.slane %v290, 7
  %v377 = vrot.slane %v291, 7
  %v378 = vsel %vm297, %v376, %v377
  %v379 = vsel %vm297, %v377, %v376
  %v380 = vlaneseq
  %v381 = vshrl.u32 %v380, 7
  %v382 = vsub.s32 0, %v381
  %v383 = vrot.slane %v290, %v382
  %v384 = vsel %vm35, %v383, %v379
  %v385 = vsel %vm36, %v383, %v378
  %v386 = vmul.f32 %v304, %v169
  %v387 = vmul.f32 %v305, %v170
  %v388 = vmul.f32 %v334, %v216
  %v389 = vmul.f32 %v335, %v217
  %v390 = vadd.f32 %v386, %v388
  %v391 = vadd.f32 %v387, %v389
  %v392 = vmul.f32 %v364, %v264
  %v393 = vmul.f32 %v365, %v265
  %v394 = vadd.f32 %v390, %v392
  %v395 = vadd.f32 %v391, %v393
  %v396 = vmul.f32 %v314, %v169
  %v397 = vmul.f32 %v315, %v170
  %v398 = vmul.f32 %v344, %v216
  %v399 = vmul.f32 %v345, %v217
  %v400 = vadd.f32 %v396, %v398
  %v401 = vadd.f32 %v397, %v399
  %v402 = vmul.f32 %v374, %v264
  %v403 = vmul.f32 %v375, %v265
  %v404 = vadd.f32 %v400, %v402
  %v405 = vadd.f32 %v401, %v403
  %v406 = vmul.f32 %v324, %v169
  %v407 = vmul.f32 %v325, %v170
  %v408 = vmul.f32 %v354, %v216
  %v409 = vmul.f32 %v355, %v217
  %v410 = vadd.f32 %v406, %v408
  %v411 = vadd.f32 %v407, %v409
  %v412 = vmul.f32 %v384, %v264
  %v413 = vmul.f32 %v385, %v265
  %v414 = vadd.f32 %v410, %v412
  %v415 = vadd.f32 %v411, %v413
  %v416 = vld [vmem:[%s2] sm:$0xff]
  %v417 = vld [vmem:[%s2 + $0x8] sm:$0xff]
  %419 = vset.pattern.permute.xlu0 0
  %420 = vperm.xlu0 %419, %v416
  %v421 = vpop.permute.xlu0 %420
  %424 = vset.pattern.permute.xlu0 0
  %425 = vperm.xlu0 %424, %v417
  %v426 = vpop.permute.xlu0 %425
  %s428 = scalar_lea.vmem %s2, 48
  %v429 = vld [vmem:[%s428] sm:$0xff]
  %v430 = vld [vmem:[%s428 + $0x8] sm:$0xff]
  %432 = vset.pattern.permute.xlu0 0
  %433 = vperm.xlu0 %432, %v429
  %v434 = vpop.permute.xlu0 %433
  %437 = vset.pattern.permute.xlu0 0
  %438 = vperm.xlu0 %437, %v430
  %v439 = vpop.permute.xlu0 %438
  %s441 = scalar_lea.vmem %s2, 96
  %v442 = vld [vmem:[%s441] sm:$0xff]
  %v443 = vld [vmem:[%s441 + $0x8] sm:$0xff]
  %445 = vset.pattern.permute.xlu0 0
  %446 = vperm.xlu0 %445, %v442
  %v447 = vpop.permute.xlu0 %446
  %450 = vset.pattern.permute.xlu0 0
  %451 = vperm.xlu0 %450, %v443
  %v452 = vpop.permute.xlu0 %451
  %v454 = vmul.f32 %v421, %v394
  %v455 = vmul.f32 %v426, %v395
  %v456 = vmul.f32 %v434, %v404
  %v457 = vmul.f32 %v439, %v405
  %v458 = vadd.f32 %v454, %v456
  %v459 = vadd.f32 %v455, %v457
  %v460 = vmul.f32 %v447, %v414
  %v461 = vmul.f32 %v452, %v415
  %v462 = vadd.f32 %v458, %v460
  %v463 = vadd.f32 %v459, %v461
  %464 = vst [vmem:[%s4] sm:$0xff] %v462
  %465 = vst [vmem:[%s4 + $0x8] sm:$0xff] %v463
  %s466 = scalar_lea.vmem %s2, 16
  %v467 = vld [vmem:[%s466] sm:$0xff]
  %v468 = vld [vmem:[%s466 + $0x8] sm:$0xff]
  %470 = vset.pattern.permute.xlu0 0
  %471 = vperm.xlu0 %470, %v467
  %v472 = vpop.permute.xlu0 %471
  %475 = vset.pattern.permute.xlu0 0
  %476 = vperm.xlu0 %475, %v468
  %v477 = vpop.permute.xlu0 %476
  %s479 = scalar_lea.vmem %s2, 64
  %v480 = vld [vmem:[%s479] sm:$0xff]
  %v481 = vld [vmem:[%s479 + $0x8] sm:$0xff]
  %483 = vset.pattern.permute.xlu0 0
  %484 = vperm.xlu0 %483, %v480
  %v485 = vpop.permute.xlu0 %484
  %488 = vset.pattern.permute.xlu0 0
  %489 = vperm.xlu0 %488, %v481
  %v490 = vpop.permute.xlu0 %489
  %s492 = scalar_lea.vmem %s2, 112
  %v493 = vld [vmem:[%s492] sm:$0xff]
  %v494 = vld [vmem:[%s492 + $0x8] sm:$0xff]
  %496 = vset.pattern.permute.xlu0 0
  %497 = vperm.xlu0 %496, %v493
  %v498 = vpop.permute.xlu0 %497
  %501 = vset.pattern.permute.xlu0 0
  %502 = vperm.xlu0 %501, %v494
  %v503 = vpop.permute.xlu0 %502
  %v505 = vmul.f32 %v472, %v394
  %v506 = vmul.f32 %v477, %v395
  %v507 = vmul.f32 %v485, %v404
  %v508 = vmul.f32 %v490, %v405
  %v509 = vadd.f32 %v505, %v507
  %v510 = vadd.f32 %v506, %v508
  %v511 = vmul.f32 %v498, %v414
  %v512 = vmul.f32 %v503, %v415
  %v513 = vadd.f32 %v509, %v511
  %v514 = vadd.f32 %v510, %v512
  %s515 = scalar_lea.vmem %s4, 48
  %516 = vst [vmem:[%s515] sm:$0xff] %v513
  %517 = vst [vmem:[%s515 + $0x8] sm:$0xff] %v514
  %s518 = scalar_lea.vmem %s2, 32
  %v519 = vld [vmem:[%s518] sm:$0xff]
  %v520 = vld [vmem:[%s518 + $0x8] sm:$0xff]
  %522 = vset.pattern.permute.xlu0 0
  %523 = vperm.xlu0 %522, %v519
  %v524 = vpop.permute.xlu0 %523
  %527 = vset.pattern.permute.xlu0 0
  %528 = vperm.xlu0 %527, %v520
  %v529 = vpop.permute.xlu0 %528
  %s531 = scalar_lea.vmem %s2, 80
  %v532 = vld [vmem:[%s531] sm:$0xff]
  %v533 = vld [vmem:[%s531 + $0x8] sm:$0xff]
  %535 = vset.pattern.permute.xlu0 0
  %536 = vperm.xlu0 %535, %v532
  %v537 = vpop.permute.xlu0 %536
  %540 = vset.pattern.permute.xlu0 0
  %541 = vperm.xlu0 %540, %v533
  %v542 = vpop.permute.xlu0 %541
  %s544 = scalar_lea.vmem %s2, 128
  %v545 = vld [vmem:[%s544] sm:$0xff]
  %v546 = vld [vmem:[%s544 + $0x8] sm:$0xff]
  %548 = vset.pattern.permute.xlu0 0
  %549 = vperm.xlu0 %548, %v545
  %v550 = vpop.permute.xlu0 %549
  %553 = vset.pattern.permute.xlu0 0
  %554 = vperm.xlu0 %553, %v546
  %v555 = vpop.permute.xlu0 %554
  %v557 = vmul.f32 %v524, %v394
  %v558 = vmul.f32 %v529, %v395
  %v559 = vmul.f32 %v537, %v404
  %v560 = vmul.f32 %v542, %v405
  %v561 = vadd.f32 %v557, %v559
  %v562 = vadd.f32 %v558, %v560
  %v563 = vmul.f32 %v550, %v414
  %v564 = vmul.f32 %v555, %v415
  %v565 = vadd.f32 %v561, %v563
  %v566 = vadd.f32 %v562, %v564
  %s567 = scalar_lea.vmem %s4, 96
  %568 = vst [vmem:[%s567] sm:$0xff] %v565
  %569 = vst [vmem:[%s567 + $0x8] sm:$0xff] %v566
  %v570 = vmul.f32 %v304, %v181
  %v571 = vmul.f32 %v305, %v182
  %v572 = vmul.f32 %v334, %v229
  %v573 = vmul.f32 %v335, %v230
  %v574 = vadd.f32 %v570, %v572
  %v575 = vadd.f32 %v571, %v573
  %v576 = vmul.f32 %v364, %v277
  %v577 = vmul.f32 %v365, %v278
  %v578 = vadd.f32 %v574, %v576
  %v579 = vadd.f32 %v575, %v577
  %v580 = vmul.f32 %v314, %v181
  %v581 = vmul.f32 %v315, %v182
  %v582 = vmul.f32 %v344, %v229
  %v583 = vmul.f32 %v345, %v230
  %v584 = vadd.f32 %v580, %v582
  %v585 = vadd.f32 %v581, %v583
  %v586 = vmul.f32 %v374, %v277
  %v587 = vmul.f32 %v375, %v278
  %v588 = vadd.f32 %v584, %v586
  %v589 = vadd.f32 %v585, %v587
  %v590 = vmul.f32 %v324, %v181
  %v591 = vmul.f32 %v325, %v182
  %v592 = vmul.f32 %v354, %v229
  %v593 = vmul.f32 %v355, %v230
  %v594 = vadd.f32 %v590, %v592
  %v595 = vadd.f32 %v591, %v593
  %v596 = vmul.f32 %v384, %v277
  %v597 = vmul.f32 %v385, %v278
  %v598 = vadd.f32 %v594, %v596
  %v599 = vadd.f32 %v595, %v597
  %v600 = vld [vmem:[%s2] sm:$0xff]
  %v601 = vld [vmem:[%s2 + $0x8] sm:$0xff]
  %603 = vset.pattern.permute.xlu0 0
  %604 = vperm.xlu0 %603, %v600
  %v605 = vpop.permute.xlu0 %604
  %608 = vset.pattern.permute.xlu0 0
  %609 = vperm.xlu0 %608, %v601
  %v610 = vpop.permute.xlu0 %609
  %v612 = vld [vmem:[%s428] sm:$0xff]
  %v613 = vld [vmem:[%s428 + $0x8] sm:$0xff]
  %615 = vset.pattern.permute.xlu0 0
  %616 = vperm.xlu0 %615, %v612
  %v617 = vpop.permute.xlu0 %616
  %620 = vset.pattern.permute.xlu0 0
  %621 = vperm.xlu0 %620, %v613
  %v622 = vpop.permute.xlu0 %621
  %v624 = vld [vmem:[%s441] sm:$0xff]
  %v625 = vld [vmem:[%s441 + $0x8] sm:$0xff]
  %627 = vset.pattern.permute.xlu0 0
  %628 = vperm.xlu0 %627, %v624
  %v629 = vpop.permute.xlu0 %628
  %632 = vset.pattern.permute.xlu0 0
  %633 = vperm.xlu0 %632, %v625
  %v634 = vpop.permute.xlu0 %633
  %v636 = vmul.f32 %v605, %v578
  %v637 = vmul.f32 %v610, %v579
  %v638 = vmul.f32 %v617, %v588
  %v639 = vmul.f32 %v622, %v589
  %v640 = vadd.f32 %v636, %v638
  %v641 = vadd.f32 %v637, %v639
  %v642 = vmul.f32 %v629, %v598
  %v643 = vmul.f32 %v634, %v599
  %v644 = vadd.f32 %v640, %v642
  %v645 = vadd.f32 %v641, %v643
  %s646 = scalar_lea.vmem %s4, 16
  %647 = vst [vmem:[%s646] sm:$0xff] %v644
  %648 = vst [vmem:[%s646 + $0x8] sm:$0xff] %v645
  %v649 = vld [vmem:[%s466] sm:$0xff]
  %v650 = vld [vmem:[%s466 + $0x8] sm:$0xff]
  %652 = vset.pattern.permute.xlu0 0
  %653 = vperm.xlu0 %652, %v649
  %v654 = vpop.permute.xlu0 %653
  %657 = vset.pattern.permute.xlu0 0
  %658 = vperm.xlu0 %657, %v650
  %v659 = vpop.permute.xlu0 %658
  %v661 = vld [vmem:[%s479] sm:$0xff]
  %v662 = vld [vmem:[%s479 + $0x8] sm:$0xff]
  %664 = vset.pattern.permute.xlu0 0
  %665 = vperm.xlu0 %664, %v661
  %v666 = vpop.permute.xlu0 %665
  %669 = vset.pattern.permute.xlu0 0
  %670 = vperm.xlu0 %669, %v662
  %v671 = vpop.permute.xlu0 %670
  %v673 = vld [vmem:[%s492] sm:$0xff]
  %v674 = vld [vmem:[%s492 + $0x8] sm:$0xff]
  %676 = vset.pattern.permute.xlu0 0
  %677 = vperm.xlu0 %676, %v673
  %v678 = vpop.permute.xlu0 %677
  %681 = vset.pattern.permute.xlu0 0
  %682 = vperm.xlu0 %681, %v674
  %v683 = vpop.permute.xlu0 %682
  %v685 = vmul.f32 %v654, %v578
  %v686 = vmul.f32 %v659, %v579
  %v687 = vmul.f32 %v666, %v588
  %v688 = vmul.f32 %v671, %v589
  %v689 = vadd.f32 %v685, %v687
  %v690 = vadd.f32 %v686, %v688
  %v691 = vmul.f32 %v678, %v598
  %v692 = vmul.f32 %v683, %v599
  %v693 = vadd.f32 %v689, %v691
  %v694 = vadd.f32 %v690, %v692
  %s695 = scalar_lea.vmem %s4, 64
  %696 = vst [vmem:[%s695] sm:$0xff] %v693
  %697 = vst [vmem:[%s695 + $0x8] sm:$0xff] %v694
  %v698 = vld [vmem:[%s518] sm:$0xff]
  %v699 = vld [vmem:[%s518 + $0x8] sm:$0xff]
  %701 = vset.pattern.permute.xlu0 0
  %702 = vperm.xlu0 %701, %v698
  %v703 = vpop.permute.xlu0 %702
  %706 = vset.pattern.permute.xlu0 0
  %707 = vperm.xlu0 %706, %v699
  %v708 = vpop.permute.xlu0 %707
  %v710 = vld [vmem:[%s531] sm:$0xff]
  %v711 = vld [vmem:[%s531 + $0x8] sm:$0xff]
  %713 = vset.pattern.permute.xlu0 0
  %714 = vperm.xlu0 %713, %v710
  %v715 = vpop.permute.xlu0 %714
  %718 = vset.pattern.permute.xlu0 0
  %719 = vperm.xlu0 %718, %v711
  %v720 = vpop.permute.xlu0 %719
  %v722 = vld [vmem:[%s544] sm:$0xff]
  %v723 = vld [vmem:[%s544 + $0x8] sm:$0xff]
  %725 = vset.pattern.permute.xlu0 0
  %726 = vperm.xlu0 %725, %v722
  %v727 = vpop.permute.xlu0 %726
  %730 = vset.pattern.permute.xlu0 0
  %731 = vperm.xlu0 %730, %v723
  %v732 = vpop.permute.xlu0 %731
  %v734 = vmul.f32 %v703, %v578
  %v735 = vmul.f32 %v708, %v579
  %v736 = vmul.f32 %v715, %v588
  %v737 = vmul.f32 %v720, %v589
  %v738 = vadd.f32 %v734, %v736
  %v739 = vadd.f32 %v735, %v737
  %v740 = vmul.f32 %v727, %v598
  %v741 = vmul.f32 %v732, %v599
  %v742 = vadd.f32 %v738, %v740
  %v743 = vadd.f32 %v739, %v741
  %s744 = scalar_lea.vmem %s4, 112
  %745 = vst [vmem:[%s744] sm:$0xff] %v742
  %746 = vst [vmem:[%s744 + $0x8] sm:$0xff] %v743
  %v747 = vmul.f32 %v304, %v194
  %v748 = vmul.f32 %v305, %v195
  %v749 = vmul.f32 %v334, %v242
  %v750 = vmul.f32 %v335, %v243
  %v751 = vadd.f32 %v747, %v749
  %v752 = vadd.f32 %v748, %v750
  %v753 = vmul.f32 %v364, %v290
  %v754 = vmul.f32 %v365, %v291
  %v755 = vadd.f32 %v751, %v753
  %v756 = vadd.f32 %v752, %v754
  %v757 = vmul.f32 %v314, %v194
  %v758 = vmul.f32 %v315, %v195
  %v759 = vmul.f32 %v344, %v242
  %v760 = vmul.f32 %v345, %v243
  %v761 = vadd.f32 %v757, %v759
  %v762 = vadd.f32 %v758, %v760
  %v763 = vmul.f32 %v374, %v290
  %v764 = vmul.f32 %v375, %v291
  %v765 = vadd.f32 %v761, %v763
  %v766 = vadd.f32 %v762, %v764
  %v767 = vmul.f32 %v324, %v194
  %v768 = vmul.f32 %v325, %v195
  %v769 = vmul.f32 %v354, %v242
  %v770 = vmul.f32 %v355, %v243
  %v771 = vadd.f32 %v767, %v769
  %v772 = vadd.f32 %v768, %v770
  %v773 = vmul.f32 %v384, %v290
  %v774 = vmul.f32 %v385, %v291
  %v775 = vadd.f32 %v771, %v773
  %v776 = vadd.f32 %v772, %v774
  %v777 = vld [vmem:[%s2] sm:$0xff]
  %v778 = vld [vmem:[%s2 + $0x8] sm:$0xff]
  %780 = vset.pattern.permute.xlu0 0
  %781 = vperm.xlu0 %780, %v777
  %v782 = vpop.permute.xlu0 %781
  %785 = vset.pattern.permute.xlu0 0
  %786 = vperm.xlu0 %785, %v778
  %v787 = vpop.permute.xlu0 %786
  %v789 = vld [vmem:[%s428] sm:$0xff]
  %v790 = vld [vmem:[%s428 + $0x8] sm:$0xff]
  %792 = vset.pattern.permute.xlu0 0
  %793 = vperm.xlu0 %792, %v789
  %v794 = vpop.permute.xlu0 %793
  %797 = vset.pattern.permute.xlu0 0
  %798 = vperm.xlu0 %797, %v790
  %v799 = vpop.permute.xlu0 %798
  %v801 = vld [vmem:[%s441] sm:$0xff]
  %v802 = vld [vmem:[%s441 + $0x8] sm:$0xff]
  %804 = vset.pattern.permute.xlu0 0
  %805 = vperm.xlu0 %804, %v801
  %v806 = vpop.permute.xlu0 %805
  %809 = vset.pattern.permute.xlu0 0
  %810 = vperm.xlu0 %809, %v802
  %v811 = vpop.permute.xlu0 %810
  %v813 = vmul.f32 %v782, %v755
  %v814 = vmul.f32 %v787, %v756
  %v815 = vmul.f32 %v794, %v765
  %v816 = vmul.f32 %v799, %v766
  %v817 = vadd.f32 %v813, %v815
  %v818 = vadd.f32 %v814, %v816
  %v819 = vmul.f32 %v806, %v775
  %v820 = vmul.f32 %v811, %v776
  %v821 = vadd.f32 %v817, %v819
  %v822 = vadd.f32 %v818, %v820
  %s823 = scalar_lea.vmem %s4, 32
  %824 = vst [vmem:[%s823] sm:$0xff] %v821
  %825 = vst [vmem:[%s823 + $0x8] sm:$0xff] %v822
  %v826 = vld [vmem:[%s466] sm:$0xff]
  %v827 = vld [vmem:[%s466 + $0x8] sm:$0xff]
  %829 = vset.pattern.permute.xlu0 0
  %830 = vperm.xlu0 %829, %v826
  %v831 = vpop.permute.xlu0 %830
  %834 = vset.pattern.permute.xlu0 0
  %835 = vperm.xlu0 %834, %v827
  %v836 = vpop.permute.xlu0 %835
  %v838 = vld [vmem:[%s479] sm:$0xff]
  %v839 = vld [vmem:[%s479 + $0x8] sm:$0xff]
  %841 = vset.pattern.permute.xlu0 0
  %842 = vperm.xlu0 %841, %v838
  %v843 = vpop.permute.xlu0 %842
  %846 = vset.pattern.permute.xlu0 0
  %847 = vperm.xlu0 %846, %v839
  %v848 = vpop.permute.xlu0 %847
  %v850 = vld [vmem:[%s492] sm:$0xff]
  %v851 = vld [vmem:[%s492 + $0x8] sm:$0xff]
  %853 = vset.pattern.permute.xlu0 0
  %854 = vperm.xlu0 %853, %v850
  %v855 = vpop.permute.xlu0 %854
  %858 = vset.pattern.permute.xlu0 0
  %859 = vperm.xlu0 %858, %v851
  %v860 = vpop.permute.xlu0 %859
  %v862 = vmul.f32 %v831, %v755
  %v863 = vmul.f32 %v836, %v756
  %v864 = vmul.f32 %v843, %v765
  %v865 = vmul.f32 %v848, %v766
  %v866 = vadd.f32 %v862, %v864
  %v867 = vadd.f32 %v863, %v865
  %v868 = vmul.f32 %v855, %v775
  %v869 = vmul.f32 %v860, %v776
  %v870 = vadd.f32 %v866, %v868
  %v871 = vadd.f32 %v867, %v869
  %s872 = scalar_lea.vmem %s4, 80
  %873 = vst [vmem:[%s872] sm:$0xff] %v870
  %874 = vst [vmem:[%s872 + $0x8] sm:$0xff] %v871
  %v875 = vld [vmem:[%s518] sm:$0xff]
  %v876 = vld [vmem:[%s518 + $0x8] sm:$0xff]
  %878 = vset.pattern.permute.xlu0 0
  %879 = vperm.xlu0 %878, %v875
  %v880 = vpop.permute.xlu0 %879
  %883 = vset.pattern.permute.xlu0 0
  %884 = vperm.xlu0 %883, %v876
  %v885 = vpop.permute.xlu0 %884
  %v887 = vld [vmem:[%s531] sm:$0xff]
  %v888 = vld [vmem:[%s531 + $0x8] sm:$0xff]
  %890 = vset.pattern.permute.xlu0 0
  %891 = vperm.xlu0 %890, %v887
  %v892 = vpop.permute.xlu0 %891
  %895 = vset.pattern.permute.xlu0 0
  %896 = vperm.xlu0 %895, %v888
  %v897 = vpop.permute.xlu0 %896
  %v899 = vld [vmem:[%s544] sm:$0xff]
  %v900 = vld [vmem:[%s544 + $0x8] sm:$0xff]
  %902 = vset.pattern.permute.xlu0 0
  %903 = vperm.xlu0 %902, %v899
  %v904 = vpop.permute.xlu0 %903
  %907 = vset.pattern.permute.xlu0 0
  %908 = vperm.xlu0 %907, %v900
  %v909 = vpop.permute.xlu0 %908
  %v911 = vmul.f32 %v880, %v755
  %v912 = vmul.f32 %v885, %v756
  %v913 = vmul.f32 %v892, %v765
  %v914 = vmul.f32 %v897, %v766
  %v915 = vadd.f32 %v911, %v913
  %v916 = vadd.f32 %v912, %v914
  %v917 = vmul.f32 %v904, %v775
  %v918 = vmul.f32 %v909, %v776
  %v919 = vadd.f32 %v915, %v917
  %v920 = vadd.f32 %v916, %v918
  %s921 = scalar_lea.vmem %s4, 128
  %922 = vst [vmem:[%s921] sm:$0xff] %v919
  %923 = vst [vmem:[%s921 + $0x8] sm:$0xff] %v920
  // Predicated region
  $region14: #{a_call__.1} parent=0 // pred_check
    _
  $region15: #{a_call__.1} parent=0 // pred_check_branch
    %925 = sbr.rel (0) target = $region17
  $region16: #{a_call__.1} parent=0 // pred_region
    _
  $region17: #{a_call__.1} parent=0 // pred_fallthru
    _
  // Predicated region
  $region18: #{a_call__.1} parent=0 // pred_check
    _
  $region19: #{a_call__.1} parent=0 // pred_check_branch
    %927 = sbr.rel (0) target = $region21
  $region20: #{a_call__.1} parent=0 // pred_region
    _
  $region21: #{a_call__.1} parent=0 // pred_fallthru
    _
  // Predicated region
  $region22: #{a_call__.1} parent=0 // pred_check
    _
  $region23: #{a_call__.1} parent=0 // pred_check_branch
    %929 = sbr.rel (0) target = $region25
  $region24: #{a_call__.1} parent=0 // pred_region
    _
  $region25: #{a_call__.1} parent=0 // pred_fallthru
    _
  // Predicated region
  $region26: #{a_call__.1} parent=0 // pred_check
    _
  $region27: #{a_call__.1} parent=0 // pred_check_branch
    %931 = sbr.rel (0) target = $region29
  $region28: #{a_call__.1} parent=0 // pred_region
    _
  $region29: #{a_call__.1} parent=0 // pred_fallthru
    _

</llo_original>
